<compile_context>
chip_gen: v6e
topology: v6e:2x2x1
jax: 0.10.0
libtpu: 0.0.40
codegen_flags: <defaults>
</compile_context>

<pallas_src>
import numpy as np
import jax
import jax.numpy as jnp
from jax.experimental import pallas as pl
from jax.experimental.pallas import tpu as pltpu


def sym_norm_adj_np(W: np.ndarray) -> np.ndarray:
    """Replicates sym_norm_Adj from the PyTorch file (pure numpy glue)."""
    assert W.shape[0] == W.shape[1]
    N = W.shape[0]
    W = W + 0.5 * np.identity(N)
    D = np.diag(1.0 / np.sum(W, axis=1))
    M = np.sqrt(D) @ W @ np.sqrt(D)
    return M.astype(np.float32)


# --------------------------------------------------------------------------- #
# Kernel
# --------------------------------------------------------------------------- #
def embgcn2_kernel(x_ref, e_ref, e_bn_ref, colsum_ref, wlin_ref, blin_ref,
                   wpool_ref, bpool_ref, expd_ref, sel_ref, out_ref, xg_ref):
    """One timestep.  All row dimensions are B*N (row r = b*N + n).

    x_ref      (B*N, Ci)   input x, row-major over (batch, node)
    e_ref      (N, D)      node embeddings
    e_bn_ref   (B*N, D)    node embeddings tiled over batch
    colsum_ref (B*N, 1)    hoisted softmax(adj,-1) column sums (tiled over batch)
    wlin_ref   (Ci, Co)    Linear weight (applied as x @ W)
    blin_ref   (1, Co)     Linear bias
    wpool_ref  (Ci, D*Co)  weights_pool.transpose(1,0,2).reshape(Ci, D*Co)
    bpool_ref  (D, Co)     bias_pool
    expd_ref   (D, D*Co)   0/1 expansion: (E @ expd)[r, d*Co+o] = E[r, d]
    sel_ref    (D*Co, Co)  0/1 selector summing over d
    out_ref    (B*N, Co)
    xg_ref     (B*N, Ci)   VMEM scratch for the node-mixed activations
    """
    f32 = jnp.float32
    BN, Ci = x_ref.shape
    N, D = e_ref.shape
    B = BN // N

    x_bn = x_ref[...]
    E = e_ref[...]
    E_bn = e_bn_ref[...]

    # ---- supports (without the identity): s = softmax(relu(E E^T), axis=1) ----
    logits = jax.lax.dot_general(E, E, (((1,), (1,)), ((), ())),
                                 preferred_element_type=f32)          # (N, N) MXU
    logits = jnp.maximum(logits, 0.0)
    m = jnp.max(logits, axis=1, keepdims=True)
    ex = jnp.exp(logits - m)
    s = ex * pl.reciprocal(jnp.sum(ex, axis=1, keepdims=True), approx=True)

    # ---- x_g = (I + s) · x : block-diagonal node mixing, per batch, written
    #      directly into the (B*N, Ci) row-major scratch (no kron'd constants).
    for b in range(B):                                    # unrolled, B small
        xb = x_bn[b * N:(b + 1) * N, :]                   # (N, Ci)
        xg_ref[b * N:(b + 1) * N, :] = xb + jnp.dot(s, xb,
                                                    preferred_element_type=f32)
    x_g = xg_ref[...]                                     # (B*N, Ci)

    # ---- static branch: colsum scale + nn.Linear (shared weights, M = B*N) ----
    x_lin = jnp.dot(colsum_ref[...] * x_bn, wlin_ref[...],
                    preferred_element_type=f32) + blin_ref[...]       # (B*N, Co)

    # ---- graph conv with per-node weights, all M = B*N MXU matmuls ----
    t = jnp.dot(x_g, wpool_ref[...], preferred_element_type=f32)      # (B*N, D*Co)
    e_exp = jnp.dot(E_bn, expd_ref[...], preferred_element_type=f32)  # (B*N, D*Co)
    x_gconv = jnp.dot(t * e_exp, sel_ref[...],
                      preferred_element_type=f32)                     # (B*N, Co)
    x_gconv = x_gconv + jnp.dot(E_bn, bpool_ref[...],
                                preferred_element_type=f32)           # + E @ bias_pool

    # ---- gate + combine ----
    out_ref[...] = x_gconv + jax.nn.sigmoid(x_lin) * x_lin


# --------------------------------------------------------------------------- #
# Constant preparation — built once at parameter-init time, reused every step.
# --------------------------------------------------------------------------- #
def prepare_embgcn2_constants(node_embeddings, adj_softmaxed, weights_pool,
                              bias_pool, w_lin, b_lin, batch_size):
    f32 = jnp.float32
    N, D = node_embeddings.shape
    _, Ci, Co = weights_pool.shape
    B = batch_size

    E = node_embeddings.astype(f32)
    # Hoisted constant: the 'nm,bmc->bmc' einsum only needs the column sums of
    # softmax(adj, -1).
    colsum = jnp.sum(jax.nn.softmax(adj_softmaxed.astype(f32), axis=-1),
                     axis=0).reshape(N, 1)
    colsum_bn = jnp.tile(colsum, (B, 1))                               # (B*N, 1)
    E_bn = jnp.tile(E, (B, 1))                                         # (B*N, D)

    wpool2d = jnp.transpose(weights_pool.astype(f32),
                            (1, 0, 2)).reshape(Ci, D * Co)             # (Ci, D*Co)
    expd = jnp.kron(jnp.eye(D, dtype=f32), jnp.ones((1, Co), f32))     # (D, D*Co)
    sel = jnp.kron(jnp.ones((D, 1), f32), jnp.eye(Co, dtype=f32))      # (D*Co, Co)

    return dict(E=E, E_bn=E_bn, colsum_bn=colsum_bn,
                wlin=w_lin.astype(f32), blin=b_lin.reshape(1, Co).astype(f32),
                wpool2d=wpool2d, bpool=bias_pool.astype(f32),
                expd=expd, sel=sel)


# --------------------------------------------------------------------------- #
# Wrappers
# --------------------------------------------------------------------------- #
def embgcn2_forward_seq(x_seq, consts):
    """x_seq: (T, B, N, Ci) -> (T, B, N, Co).  Grid over timesteps: constants
    stay VMEM-resident (same block every step), x/out are pipelined."""
    T, B, N, Ci = x_seq.shape
    D, Co = consts['bpool'].shape
    BN = B * N
    f32 = jnp.float32

    x_bn = x_seq.astype(f32).reshape(T, BN, Ci)

    const_arrays = (consts['E'], consts['E_bn'], consts['colsum_bn'],
                    consts['wlin'], consts['blin'], consts['wpool2d'],
                    consts['bpool'], consts['expd'], consts['sel'])
    # Same block index every step -> DMA'd once, resident across the grid.
    const_specs = [pl.BlockSpec(a.shape, lambda t: (0, 0)) for a in const_arrays]

    out_bn = pl.pallas_call(
        embgcn2_kernel,
        out_shape=jax.ShapeDtypeStruct((T, BN, Co), f32),
        grid=(T,),
        in_specs=[pl.BlockSpec((None, BN, Ci), lambda t: (t, 0, 0))] + const_specs,
        out_specs=pl.BlockSpec((None, BN, Co), lambda t: (t, 0, 0)),
        scratch_shapes=[pltpu.VMEM((BN, Ci), f32)],
        compiler_params=pltpu.CompilerParams(
            dimension_semantics=("parallel",)),   # v7x: shard steps over both TCs
    )(x_bn, *const_arrays)

    return out_bn.reshape(T, B, N, Co)


def embgcn2_forward(x, consts):
    """Single step, matching the PyTorch module's forward: (B, N, Ci) -> (B, N, Co)."""
    return embgcn2_forward_seq(x[None, ...], consts)[0]


# --------------------------------------------------------------------------- #
# Pure-JAX reference mirroring the PyTorch forward (for verification).
# --------------------------------------------------------------------------- #
def embgcn2_ref(x, E, adj_sm, wpool, bpool, wlin, blin):
    N = E.shape[0]
    s = jax.nn.softmax(jnp.maximum(E @ E.T, 0.0), axis=1)
    supports = jnp.eye(N, dtype=jnp.float32) + s
    a = jax.nn.softmax(adj_sm, axis=-1)
    x_static = jnp.einsum('nm,bmc->bmc', a, x)
    x_static = x_static @ wlin + blin
    weights = jnp.einsum('nd,dio->nio', E, wpool)
    bias = E @ bpool
    x_g = jnp.einsum('nm,bmc->bnc', supports, x)
    x_gconv = jnp.einsum('bni,nio->bno', x_g, weights) + bias
    return x_gconv + jax.nn.sigmoid(x_static) * x_static


if __name__ == "__main__":
    # Small shapes consistent with the module:
    #   B=8 batches, N=16 nodes, dim_in=8, dim_out=16, embed_dim=8 (cheb_k unused),
    #   T=4 timesteps for the sequence/grid entry point.
    B, N, Ci, Co, D, T = 8, 16, 8, 16, 8, 4

    key = jax.random.PRNGKey(0)
    k1, k2, k3, k4, k5, k6, k7, k8 = jax.random.split(key, 8)

    x = jax.random.normal(k1, (B, N, Ci), jnp.float32)
    x_seq = jax.random.normal(k8, (T, B, N, Ci), jnp.float32)
    node_emb = jax.random.normal(k2, (N, D), jnp.float32)

    # adjacency -> sym_norm_Adj -> init-time F.softmax (legacy 2-D => dim=1)
    adj_np = np.asarray(jax.random.uniform(k3, (N, N), jnp.float32))
    adj_norm = sym_norm_adj_np(adj_np)
    adj_sm = jax.nn.softmax(jnp.asarray(adj_norm), axis=1)

    # deterministic parameter init (shapes from __init__)
    weights_pool = jax.random.normal(k4, (D, Ci, Co), jnp.float32) * 0.1
    bias_pool = jax.random.normal(k5, (D, Co), jnp.float32) * 0.1
    w_lin = jax.random.normal(k6, (Ci, Co), jnp.float32) * 0.1   # Linear.weight.T
    b_lin = jax.random.normal(k7, (Co,), jnp.float32) * 0.1

    # Constants built once (parameter-init time), reused for every step below.
    consts = prepare_embgcn2_constants(node_emb, adj_sm, weights_pool, bias_pool,
                                       w_lin, b_lin, batch_size=B)

    # --- single step (module forward semantics) ---
    out = jax.block_until_ready(embgcn2_forward(x, consts))
    ref = embgcn2_ref(x, node_emb, adj_sm, weights_pool, bias_pool, w_lin, b_lin)
    # Tolerance covers pl.reciprocal(approx=True) in the softmax denominator;
    # still tight enough to catch layout/indexing errors (those are O(1)).
    np.testing.assert_allclose(np.asarray(out), np.asarray(ref),
                               rtol=2e-3, atol=2e-3)

    # --- timestep-grid path (constants VMEM-resident, x/out pipelined) ---
    out_seq = jax.block_until_ready(embgcn2_forward_seq(x_seq, consts))
    ref_seq = jax.vmap(lambda xt: embgcn2_ref(xt, node_emb, adj_sm, weights_pool,
                                              bias_pool, w_lin, b_lin))(x_seq)
    np.testing.assert_allclose(np.asarray(out_seq), np.asarray(ref_seq),
                               rtol=2e-3, atol=2e-3)

    print("KERNEL_OK")
</pallas_src>

<mosaic_0001>
module attributes {stable_mosaic.version = 11 : i64} {
  func.func @embgcn2_kernel(%arg0: i32, %arg1: memref<1x128x8xf32, #tpu.memory_space<vmem>>, %arg2: memref<16x8xf32, #tpu.memory_space<vmem>>, %arg3: memref<128x8xf32, #tpu.memory_space<vmem>>, %arg4: memref<128x1xf32, #tpu.memory_space<vmem>>, %arg5: memref<8x16xf32, #tpu.memory_space<vmem>>, %arg6: memref<1x16xf32, #tpu.memory_space<vmem>>, %arg7: memref<8x128xf32, #tpu.memory_space<vmem>>, %arg8: memref<8x16xf32, #tpu.memory_space<vmem>>, %arg9: memref<8x128xf32, #tpu.memory_space<vmem>>, %arg10: memref<128x16xf32, #tpu.memory_space<vmem>>, %arg11: memref<1x128x16xf32, #tpu.memory_space<vmem>>, %arg12: memref<128x8xf32, #tpu.memory_space<vmem>>) attributes {dimension_semantics = [#tpu.dimension_semantics<parallel>], iteration_bounds = array<i64: 1>, scalar_prefetch = 0 : i64, scratch_operands = 1 : i64, tpu.core_type = #tpu.core_type<tc>, window_params = [{transform_indices = @transform_0, window_bounds = array<i64: 1, 128, 8>}, {pipeline_mode = #tpu.pipeline_mode<synchronous>, transform_indices = @transform_1, window_bounds = array<i64: 16, 8>}, {pipeline_mode = #tpu.pipeline_mode<synchronous>, transform_indices = @transform_2, window_bounds = array<i64: 128, 8>}, {pipeline_mode = #tpu.pipeline_mode<synchronous>, transform_indices = @transform_3, window_bounds = array<i64: 128, 1>}, {pipeline_mode = #tpu.pipeline_mode<synchronous>, transform_indices = @transform_4, window_bounds = array<i64: 8, 16>}, {pipeline_mode = #tpu.pipeline_mode<synchronous>, transform_indices = @transform_5, window_bounds = array<i64: 1, 16>}, {pipeline_mode = #tpu.pipeline_mode<synchronous>, transform_indices = @transform_6, window_bounds = array<i64: 8, 128>}, {pipeline_mode = #tpu.pipeline_mode<synchronous>, transform_indices = @transform_7, window_bounds = array<i64: 8, 16>}, {pipeline_mode = #tpu.pipeline_mode<synchronous>, transform_indices = @transform_8, window_bounds = array<i64: 8, 128>}, {pipeline_mode = #tpu.pipeline_mode<synchronous>, transform_indices = @transform_9, window_bounds = array<i64: 128, 16>}, {transform_indices = @transform_10, window_bounds = array<i64: 1, 128, 16>}]} {
    %c0 = arith.constant 0 : index
    %c0_0 = arith.constant 0 : index
    %c0_1 = arith.constant 0 : index
    %0 = vector.load %arg1[%c0, %c0_0, %c0_1] : memref<1x128x8xf32, #tpu.memory_space<vmem>>, vector<1x128x8xf32>
    %1 = vector.shape_cast %0 : vector<1x128x8xf32> to vector<128x8xf32>
    %c0_2 = arith.constant 0 : index
    %c0_3 = arith.constant 0 : index
    %2 = vector.load %arg2[%c0_2, %c0_3] : memref<16x8xf32, #tpu.memory_space<vmem>>, vector<16x8xf32>
    %c0_4 = arith.constant 0 : index
    %c0_5 = arith.constant 0 : index
    %3 = vector.load %arg3[%c0_4, %c0_5] : memref<128x8xf32, #tpu.memory_space<vmem>>, vector<128x8xf32>
    %cst = arith.constant dense<0.000000e+00> : vector<16x16xf32>
    %4 = tpu.matmul %2, %2, %cst {dimension_numbers = #tpu.dot_dimension_numbers<[1], [1], [0], [0], [0, 0, 1, 0], [], []>} : vector<16x8xf32>, vector<16x8xf32>, vector<16x16xf32> -> vector<16x16xf32>
    %cst_6 = arith.constant 0.000000e+00 : f32
    %5 = vector.broadcast %cst_6 : f32 to vector<16x16xf32>
    %6 = arith.maximumf %4, %5 : vector<16x16xf32>
    %cst_7 = arith.constant dense<0xFF800000> : vector<16xf32>
    %7 = vector.multi_reduction <maximumf>, %6, %cst_7 [1] : vector<16x16xf32> to vector<16xf32>
    %8 = vector.shape_cast %7 : vector<16xf32> to vector<16x1xf32>
    %9 = vector.broadcast %8 : vector<16x1xf32> to vector<16x16xf32>
    %10 = arith.subf %6, %9 : vector<16x16xf32>
    %11 = math.exp %10 : vector<16x16xf32>
    %cst_8 = arith.constant dense<0.000000e+00> : vector<16xf32>
    %12 = vector.multi_reduction <add>, %11, %cst_8 [1] : vector<16x16xf32> to vector<16xf32>
    %13 = vector.shape_cast %12 : vector<16xf32> to vector<16x1xf32>
    %14 = tpu.reciprocal %13 {approx = true} : vector<16x1xf32> -> vector<16x1xf32>
    %15 = vector.broadcast %14 : vector<16x1xf32> to vector<16x16xf32>
    %16 = arith.mulf %11, %15 : vector<16x16xf32>
    %17 = vector.extract_strided_slice %1 {offsets = [0, 0], sizes = [16, 8], strides = [1, 1]} : vector<128x8xf32> to vector<16x8xf32>
    %cst_9 = arith.constant dense<0.000000e+00> : vector<16x8xf32>
    %18 = tpu.matmul %16, %17, %cst_9 {dimension_numbers = #tpu.dot_dimension_numbers<[1], [0], [0], [1], [0, 0, 1, 1], [], []>} : vector<16x16xf32>, vector<16x8xf32>, vector<16x8xf32> -> vector<16x8xf32>
    %19 = arith.addf %17, %18 : vector<16x8xf32>
    %c0_10 = arith.constant 0 : index
    %c0_11 = arith.constant 0 : index
    %20 = vector.load %arg12[%c0_10, %c0_11] : memref<128x8xf32, #tpu.memory_space<vmem>>, vector<16x8xf32>
    tpu.vector_store %arg12[%c0_10, %c0_11], %19 {strides = array<i32>} : memref<128x8xf32, #tpu.memory_space<vmem>>, vector<16x8xf32>,
    %21 = vector.extract_strided_slice %1 {offsets = [16, 0], sizes = [16, 8], strides = [1, 1]} : vector<128x8xf32> to vector<16x8xf32>
    %cst_12 = arith.constant dense<0.000000e+00> : vector<16x8xf32>
    %22 = tpu.matmul %16, %21, %cst_12 {dimension_numbers = #tpu.dot_dimension_numbers<[1], [0], [0], [1], [0, 0, 1, 1], [], []>} : vector<16x16xf32>, vector<16x8xf32>, vector<16x8xf32> -> vector<16x8xf32>
    %23 = arith.addf %21, %22 : vector<16x8xf32>
    %c16 = arith.constant 16 : index
    %c0_13 = arith.constant 0 : index
    %24 = vector.load %arg12[%c16, %c0_13] : memref<128x8xf32, #tpu.memory_space<vmem>>, vector<16x8xf32>
    tpu.vector_store %arg12[%c16, %c0_13], %23 {strides = array<i32>} : memref<128x8xf32, #tpu.memory_space<vmem>>, vector<16x8xf32>,
    %25 = vector.extract_strided_slice %1 {offsets = [32, 0], sizes = [16, 8], strides = [1, 1]} : vector<128x8xf32> to vector<16x8xf32>
    %cst_14 = arith.constant dense<0.000000e+00> : vector<16x8xf32>
    %26 = tpu.matmul %16, %25, %cst_14 {dimension_numbers = #tpu.dot_dimension_numbers<[1], [0], [0], [1], [0, 0, 1, 1], [], []>} : vector<16x16xf32>, vector<16x8xf32>, vector<16x8xf32> -> vector<16x8xf32>
    %27 = arith.addf %25, %26 : vector<16x8xf32>
    %c32 = arith.constant 32 : index
    %c0_15 = arith.constant 0 : index
    %28 = vector.load %arg12[%c32, %c0_15] : memref<128x8xf32, #tpu.memory_space<vmem>>, vector<16x8xf32>
    tpu.vector_store %arg12[%c32, %c0_15], %27 {strides = array<i32>} : memref<128x8xf32, #tpu.memory_space<vmem>>, vector<16x8xf32>,
    %29 = vector.extract_strided_slice %1 {offsets = [48, 0], sizes = [16, 8], strides = [1, 1]} : vector<128x8xf32> to vector<16x8xf32>
    %cst_16 = arith.constant dense<0.000000e+00> : vector<16x8xf32>
    %30 = tpu.matmul %16, %29, %cst_16 {dimension_numbers = #tpu.dot_dimension_numbers<[1], [0], [0], [1], [0, 0, 1, 1], [], []>} : vector<16x16xf32>, vector<16x8xf32>, vector<16x8xf32> -> vector<16x8xf32>
    %31 = arith.addf %29, %30 : vector<16x8xf32>
    %c48 = arith.constant 48 : index
    %c0_17 = arith.constant 0 : index
    %32 = vector.load %arg12[%c48, %c0_17] : memref<128x8xf32, #tpu.memory_space<vmem>>, vector<16x8xf32>
    tpu.vector_store %arg12[%c48, %c0_17], %31 {strides = array<i32>} : memref<128x8xf32, #tpu.memory_space<vmem>>, vector<16x8xf32>,
    %33 = vector.extract_strided_slice %1 {offsets = [64, 0], sizes = [16, 8], strides = [1, 1]} : vector<128x8xf32> to vector<16x8xf32>
    %cst_18 = arith.constant dense<0.000000e+00> : vector<16x8xf32>
    %34 = tpu.matmul %16, %33, %cst_18 {dimension_numbers = #tpu.dot_dimension_numbers<[1], [0], [0], [1], [0, 0, 1, 1], [], []>} : vector<16x16xf32>, vector<16x8xf32>, vector<16x8xf32> -> vector<16x8xf32>
    %35 = arith.addf %33, %34 : vector<16x8xf32>
    %c64 = arith.constant 64 : index
    %c0_19 = arith.constant 0 : index
    %36 = vector.load %arg12[%c64, %c0_19] : memref<128x8xf32, #tpu.memory_space<vmem>>, vector<16x8xf32>
    tpu.vector_store %arg12[%c64, %c0_19], %35 {strides = array<i32>} : memref<128x8xf32, #tpu.memory_space<vmem>>, vector<16x8xf32>,
    %37 = vector.extract_strided_slice %1 {offsets = [80, 0], sizes = [16, 8], strides = [1, 1]} : vector<128x8xf32> to vector<16x8xf32>
    %cst_20 = arith.constant dense<0.000000e+00> : vector<16x8xf32>
    %38 = tpu.matmul %16, %37, %cst_20 {dimension_numbers = #tpu.dot_dimension_numbers<[1], [0], [0], [1], [0, 0, 1, 1], [], []>} : vector<16x16xf32>, vector<16x8xf32>, vector<16x8xf32> -> vector<16x8xf32>
    %39 = arith.addf %37, %38 : vector<16x8xf32>
    %c80 = arith.constant 80 : index
    %c0_21 = arith.constant 0 : index
    %40 = vector.load %arg12[%c80, %c0_21] : memref<128x8xf32, #tpu.memory_space<vmem>>, vector<16x8xf32>
    tpu.vector_store %arg12[%c80, %c0_21], %39 {strides = array<i32>} : memref<128x8xf32, #tpu.memory_space<vmem>>, vector<16x8xf32>,
    %41 = vector.extract_strided_slice %1 {offsets = [96, 0], sizes = [16, 8], strides = [1, 1]} : vector<128x8xf32> to vector<16x8xf32>
    %cst_22 = arith.constant dense<0.000000e+00> : vector<16x8xf32>
    %42 = tpu.matmul %16, %41, %cst_22 {dimension_numbers = #tpu.dot_dimension_numbers<[1], [0], [0], [1], [0, 0, 1, 1], [], []>} : vector<16x16xf32>, vector<16x8xf32>, vector<16x8xf32> -> vector<16x8xf32>
    %43 = arith.addf %41, %42 : vector<16x8xf32>
    %c96 = arith.constant 96 : index
    %c0_23 = arith.constant 0 : index
    %44 = vector.load %arg12[%c96, %c0_23] : memref<128x8xf32, #tpu.memory_space<vmem>>, vector<16x8xf32>
    tpu.vector_store %arg12[%c96, %c0_23], %43 {strides = array<i32>} : memref<128x8xf32, #tpu.memory_space<vmem>>, vector<16x8xf32>,
    %45 = vector.extract_strided_slice %1 {offsets = [112, 0], sizes = [16, 8], strides = [1, 1]} : vector<128x8xf32> to vector<16x8xf32>
    %cst_24 = arith.constant dense<0.000000e+00> : vector<16x8xf32>
    %46 = tpu.matmul %16, %45, %cst_24 {dimension_numbers = #tpu.dot_dimension_numbers<[1], [0], [0], [1], [0, 0, 1, 1], [], []>} : vector<16x16xf32>, vector<16x8xf32>, vector<16x8xf32> -> vector<16x8xf32>
    %47 = arith.addf %45, %46 : vector<16x8xf32>
    %c112 = arith.constant 112 : index
    %c0_25 = arith.constant 0 : index
    %48 = vector.load %arg12[%c112, %c0_25] : memref<128x8xf32, #tpu.memory_space<vmem>>, vector<16x8xf32>
    tpu.vector_store %arg12[%c112, %c0_25], %47 {strides = array<i32>} : memref<128x8xf32, #tpu.memory_space<vmem>>, vector<16x8xf32>,
    %c0_26 = arith.constant 0 : index
    %c0_27 = arith.constant 0 : index
    %49 = vector.load %arg12[%c0_26, %c0_27] : memref<128x8xf32, #tpu.memory_space<vmem>>, vector<128x8xf32>
    %c0_28 = arith.constant 0 : index
    %c0_29 = arith.constant 0 : index
    %50 = vector.load %arg4[%c0_28, %c0_29] : memref<128x1xf32, #tpu.memory_space<vmem>>, vector<128x1xf32>
    %51 = vector.broadcast %50 : vector<128x1xf32> to vector<128x8xf32>
    %52 = arith.mulf %51, %1 : vector<128x8xf32>
    %c0_30 = arith.constant 0 : index
    %c0_31 = arith.constant 0 : index
    %53 = vector.load %arg5[%c0_30, %c0_31] : memref<8x16xf32, #tpu.memory_space<vmem>>, vector<8x16xf32>
    %cst_32 = arith.constant dense<0.000000e+00> : vector<128x16xf32>
    %54 = tpu.matmul %52, %53, %cst_32 {dimension_numbers = #tpu.dot_dimension_numbers<[1], [0], [0], [1], [0, 0, 1, 1], [], []>} : vector<128x8xf32>, vector<8x16xf32>, vector<128x16xf32> -> vector<128x16xf32>
    %c0_33 = arith.constant 0 : index
    %c0_34 = arith.constant 0 : index
    %55 = vector.load %arg6[%c0_33, %c0_34] : memref<1x16xf32, #tpu.memory_space<vmem>>, vector<1x16xf32>
    %56 = vector.broadcast %55 : vector<1x16xf32> to vector<128x16xf32>
    %57 = arith.addf %54, %56 : vector<128x16xf32>
    %c0_35 = arith.constant 0 : index
    %c0_36 = arith.constant 0 : index
    %58 = vector.load %arg7[%c0_35, %c0_36] : memref<8x128xf32, #tpu.memory_space<vmem>>, vector<8x128xf32>
    %cst_37 = arith.constant dense<0.000000e+00> : vector<128x128xf32>
    %59 = tpu.matmul %49, %58, %cst_37 {dimension_numbers = #tpu.dot_dimension_numbers<[1], [0], [0], [1], [0, 0, 1, 1], [], []>} : vector<128x8xf32>, vector<8x128xf32>, vector<128x128xf32> -> vector<128x128xf32>
    %c0_38 = arith.constant 0 : index
    %c0_39 = arith.constant 0 : index
    %60 = vector.load %arg9[%c0_38, %c0_39] : memref<8x128xf32, #tpu.memory_space<vmem>>, vector<8x128xf32>
    %cst_40 = arith.constant dense<0.000000e+00> : vector<128x128xf32>
    %61 = tpu.matmul %3, %60, %cst_40 {dimension_numbers = #tpu.dot_dimension_numbers<[1], [0], [0], [1], [0, 0, 1, 1], [], []>} : vector<128x8xf32>, vector<8x128xf32>, vector<128x128xf32> -> vector<128x128xf32>
    %62 = arith.mulf %59, %61 : vector<128x128xf32>
    %c0_41 = arith.constant 0 : index
    %c0_42 = arith.constant 0 : index
    %63 = vector.load %arg10[%c0_41, %c0_42] : memref<128x16xf32, #tpu.memory_space<vmem>>, vector<128x16xf32>
    %cst_43 = arith.constant dense<0.000000e+00> : vector<128x16xf32>
    %64 = tpu.matmul %62, %63, %cst_43 {dimension_numbers = #tpu.dot_dimension_numbers<[1], [0], [0], [1], [0, 0, 1, 1], [], []>} : vector<128x128xf32>, vector<128x16xf32>, vector<128x16xf32> -> vector<128x16xf32>
    %c0_44 = arith.constant 0 : index
    %c0_45 = arith.constant 0 : index
    %65 = vector.load %arg8[%c0_44, %c0_45] : memref<8x16xf32, #tpu.memory_space<vmem>>, vector<8x16xf32>
    %cst_46 = arith.constant dense<0.000000e+00> : vector<128x16xf32>
    %66 = tpu.matmul %3, %65, %cst_46 {dimension_numbers = #tpu.dot_dimension_numbers<[1], [0], [0], [1], [0, 0, 1, 1], [], []>} : vector<128x8xf32>, vector<8x16xf32>, vector<128x16xf32> -> vector<128x16xf32>
    %67 = arith.addf %64, %66 : vector<128x16xf32>
    %68 = arith.negf %57 : vector<128x16xf32>
    %69 = math.exp %68 : vector<128x16xf32>
    %cst_47 = arith.constant 1.000000e+00 : f32
    %70 = vector.broadcast %cst_47 : f32 to vector<128x16xf32>
    %71 = arith.addf %70, %69 : vector<128x16xf32>
    %72 = arith.divf %70, %71 : vector<128x16xf32>
    %73 = arith.mulf %72, %57 : vector<128x16xf32>
    %74 = arith.addf %67, %73 : vector<128x16xf32>
    %c0_48 = arith.constant 0 : index
    %c0_49 = arith.constant 0 : index
    %c0_50 = arith.constant 0 : index
    %75 = vector.load %arg11[%c0_48, %c0_49, %c0_50] : memref<1x128x16xf32, #tpu.memory_space<vmem>>, vector<1x128x16xf32>
    %76 = vector.shape_cast %75 : vector<1x128x16xf32> to vector<128x16xf32>
    %77 = vector.shape_cast %74 : vector<128x16xf32> to vector<1x128x16xf32>
    tpu.vector_store %arg11[%c0_48, %c0_49, %c0_50], %77 {strides = array<i32>} : memref<1x128x16xf32, #tpu.memory_space<vmem>>, vector<1x128x16xf32>,
    return
  }
  func.func @transform_0(%arg0: i32) -> (i32, i32, i32) {
    %c0_i32 = arith.constant 0 : i32
    %c0_i32_0 = arith.constant 0 : i32
    %c0_i32_1 = arith.constant 0 : i32
    return %arg0, %c0_i32, %c0_i32_0 : i32, i32, i32
  }
  func.func @transform_1(%arg0: i32) -> (i32, i32) {
    %c0_i32 = arith.constant 0 : i32
    %c0_i32_0 = arith.constant 0 : i32
    %c0_i32_1 = arith.constant 0 : i32
    return %c0_i32, %c0_i32_0 : i32, i32
  }
  func.func @transform_2(%arg0: i32) -> (i32, i32) {
    %c0_i32 = arith.constant 0 : i32
    %c0_i32_0 = arith.constant 0 : i32
    %c0_i32_1 = arith.constant 0 : i32
    return %c0_i32, %c0_i32_0 : i32, i32
  }
  func.func @transform_3(%arg0: i32) -> (i32, i32) {
    %c0_i32 = arith.constant 0 : i32
    %c0_i32_0 = arith.constant 0 : i32
    %c0_i32_1 = arith.constant 0 : i32
    return %c0_i32, %c0_i32_0 : i32, i32
  }
  func.func @transform_4(%arg0: i32) -> (i32, i32) {
    %c0_i32 = arith.constant 0 : i32
    %c0_i32_0 = arith.constant 0 : i32
    %c0_i32_1 = arith.constant 0 : i32
    return %c0_i32, %c0_i32_0 : i32, i32
  }
  func.func @transform_5(%arg0: i32) -> (i32, i32) {
    %c0_i32 = arith.constant 0 : i32
    %c0_i32_0 = arith.constant 0 : i32
    %c0_i32_1 = arith.constant 0 : i32
    return %c0_i32, %c0_i32_0 : i32, i32
  }
  func.func @transform_6(%arg0: i32) -> (i32, i32) {
    %c0_i32 = arith.constant 0 : i32
    %c0_i32_0 = arith.constant 0 : i32
    %c0_i32_1 = arith.constant 0 : i32
    return %c0_i32, %c0_i32_0 : i32, i32
  }
  func.func @transform_7(%arg0: i32) -> (i32, i32) {
    %c0_i32 = arith.constant 0 : i32
    %c0_i32_0 = arith.constant 0 : i32
    %c0_i32_1 = arith.constant 0 : i32
    return %c0_i32, %c0_i32_0 : i32, i32
  }
  func.func @transform_8(%arg0: i32) -> (i32, i32) {
    %c0_i32 = arith.constant 0 : i32
    %c0_i32_0 = arith.constant 0 : i32
    %c0_i32_1 = arith.constant 0 : i32
    return %c0_i32, %c0_i32_0 : i32, i32
  }
  func.func @transform_9(%arg0: i32) -> (i32, i32) {
    %c0_i32 = arith.constant 0 : i32
    %c0_i32_0 = arith.constant 0 : i32
    %c0_i32_1 = arith.constant 0 : i32
    return %c0_i32, %c0_i32_0 : i32, i32
  }
  func.func @transform_10(%arg0: i32) -> (i32, i32, i32) {
    %c0_i32 = arith.constant 0 : i32
    %c0_i32_0 = arith.constant 0 : i32
    %c0_i32_1 = arith.constant 0 : i32
    return %arg0, %c0_i32, %c0_i32_0 : i32, i32, i32
  }
}

</mosaic_0001>

<llo_original>
// kernel: tpu_custom_call.1
$region0: #{tpu_custom_call.1}
  #allocation0 [shape = 'u32[]', space=smem, size = 0x4, offset = 0x4, fixed_abs, tag = 'smem constant byte address 0x4 - core index']
  #allocation1 [shape = 'u32[144,128]{1,0:T(1,128)}', space=vmem, size = 0x12000, scoped, tag = 'internal scratch']
  #allocation2 [shape = 'f32[128,8]{1,0:T(8,128)}', space=vmem, size = 0x10000, scoped, tag = 'scratch operand']
  %s0 = inlined_call_operand.vmem [shape: f32[1,128,8], index: 0, kind: input, shape index: {}]
  %s1 = inlined_call_operand.vmem [shape: f32[16,8], index: 1, kind: input, shape index: {}]
  %s2 = inlined_call_operand.vmem [shape: f32[128,8], index: 2, kind: input, shape index: {}]
  %s3 = inlined_call_operand.vmem [shape: f32[128,1], index: 3, kind: input, shape index: {}]
  %s4 = inlined_call_operand.vmem [shape: f32[8,16], index: 4, kind: input, shape index: {}]
  %s5 = inlined_call_operand.vmem [shape: f32[1,16], index: 5, kind: input, shape index: {}]
  %s6 = inlined_call_operand.vmem [shape: f32[8,128], index: 6, kind: input, shape index: {}]
  %s7 = inlined_call_operand.vmem [shape: f32[8,16], index: 7, kind: input, shape index: {}]
  %s8 = inlined_call_operand.vmem [shape: f32[8,128], index: 8, kind: input, shape index: {}]
  %s9 = inlined_call_operand.vmem [shape: f32[128,16], index: 9, kind: input, shape index: {}]
  %s10 = inlined_call_operand.vmem [shape: f32[1,128,16], index: 10, kind: output, shape index: {}]
  %s11 = sld [smem:[#allocation0]]
  $region50: #{tpu_custom_call.1} parent=0
    _
  %s13 = ssub.s32 1, %s11
  %s14 = scalar_select 0, %s13, %s11
  // Predicated region
  $region2: #{tpu_custom_call.1} parent=0 // pred_check
    _
  $region3: #{tpu_custom_call.1} parent=0 // pred_check_branch
    %16 = sbr.rel (0) target = $region5
  $region4: #{tpu_custom_call.1} parent=0 // pred_region
    _
  $region5: #{tpu_custom_call.1} parent=0 // pred_fallthru
    _
  // Predicated region
  $region6: #{tpu_custom_call.1} parent=0 // pred_check
    _
  $region7: #{tpu_custom_call.1} parent=0 // pred_check_branch
    %18 = sbr.rel (0) target = $region9
  $region8: #{tpu_custom_call.1} parent=0 // pred_region
    _
  $region9: #{tpu_custom_call.1} parent=0 // pred_fallthru
    _
  // Predicated region
  $region10: #{tpu_custom_call.1} parent=0 // pred_check
    _
  $region11: #{tpu_custom_call.1} parent=0 // pred_check_branch
    %20 = sbr.rel (0) target = $region13
  $region12: #{tpu_custom_call.1} parent=0 // pred_region
    _
  $region13: #{tpu_custom_call.1} parent=0 // pred_fallthru
    _
  // Predicated region
  $region14: #{tpu_custom_call.1} parent=0 // pred_check
    _
  $region15: #{tpu_custom_call.1} parent=0 // pred_check_branch
    %22 = sbr.rel (0) target = $region17
  $region16: #{tpu_custom_call.1} parent=0 // pred_region
    _
  $region17: #{tpu_custom_call.1} parent=0 // pred_fallthru
    _
  // Predicated region
  $region18: #{tpu_custom_call.1} parent=0 // pred_check
    _
  $region19: #{tpu_custom_call.1} parent=0 // pred_check_branch
    %24 = sbr.rel (0) target = $region21
  $region20: #{tpu_custom_call.1} parent=0 // pred_region
    _
  $region21: #{tpu_custom_call.1} parent=0 // pred_fallthru
    _
  // Predicated region
  $region22: #{tpu_custom_call.1} parent=0 // pred_check
    _
  $region23: #{tpu_custom_call.1} parent=0 // pred_check_branch
    %26 = sbr.rel (0) target = $region25
  $region24: #{tpu_custom_call.1} parent=0 // pred_region
    _
  $region25: #{tpu_custom_call.1} parent=0 // pred_fallthru
    _
  // Predicated region
  $region26: #{tpu_custom_call.1} parent=0 // pred_check
    _
  $region27: #{tpu_custom_call.1} parent=0 // pred_check_branch
    %28 = sbr.rel (0) target = $region29
  $region28: #{tpu_custom_call.1} parent=0 // pred_region
    _
  $region29: #{tpu_custom_call.1} parent=0 // pred_fallthru
    _
  // Predicated region
  $region30: #{tpu_custom_call.1} parent=0 // pred_check
    _
  $region31: #{tpu_custom_call.1} parent=0 // pred_check_branch
    %30 = sbr.rel (0) target = $region33
  $region32: #{tpu_custom_call.1} parent=0 // pred_region
    _
  $region33: #{tpu_custom_call.1} parent=0 // pred_fallthru
    _
  // Predicated region
  $region34: #{tpu_custom_call.1} parent=0 // pred_check
    _
  $region35: #{tpu_custom_call.1} parent=0 // pred_check_branch
    %32 = sbr.rel (0) target = $region37
  $region36: #{tpu_custom_call.1} parent=0 // pred_region
    _
  $region37: #{tpu_custom_call.1} parent=0 // pred_fallthru
    _
  // Predicated region
  $region38: #{tpu_custom_call.1} parent=0 // pred_check
    _
  $region39: #{tpu_custom_call.1} parent=0 // pred_check_branch
    %34 = sbr.rel (0) target = $region41
  $region40: #{tpu_custom_call.1} parent=0 // pred_region
    _
  $region41: #{tpu_custom_call.1} parent=0 // pred_fallthru
    _
  %v35 = vld [vmem:[%s0] sm:$0xff]
  %v36 = vld [vmem:[%s0 + $0x8] sm:$0xff]
  %v37 = vld [vmem:[%s0 + $0x10] sm:$0xff]
  %v38 = vld [vmem:[%s0 + $0x18] sm:$0xff]
  %v39 = vld [vmem:[%s0 + $0x20] sm:$0xff]
  %v40 = vld [vmem:[%s0 + $0x28] sm:$0xff]
  %v41 = vld [vmem:[%s0 + $0x30] sm:$0xff]
  %v42 = vld [vmem:[%s0 + $0x38] sm:$0xff]
  %v43 = vld [vmem:[%s0 + $0x40] sm:$0xff]
  %v44 = vld [vmem:[%s0 + $0x48] sm:$0xff]
  %v45 = vld [vmem:[%s0 + $0x50] sm:$0xff]
  %v46 = vld [vmem:[%s0 + $0x58] sm:$0xff]
  %v47 = vld [vmem:[%s0 + $0x60] sm:$0xff]
  %v48 = vld [vmem:[%s0 + $0x68] sm:$0xff]
  %v49 = vld [vmem:[%s0 + $0x70] sm:$0xff]
  %v50 = vld [vmem:[%s0 + $0x78] sm:$0xff]
  %v51 = vld [vmem:[%s1] sm:$0xff]
  %v52 = vld [vmem:[%s1 + $0x8] sm:$0xff]
  %v53 = vld [vmem:[%s2] sm:$0xff]
  %v54 = vld [vmem:[%s2 + $0x8] sm:$0xff]
  %v55 = vld [vmem:[%s2 + $0x10] sm:$0xff]
  %v56 = vld [vmem:[%s2 + $0x18] sm:$0xff]
  %v57 = vld [vmem:[%s2 + $0x20] sm:$0xff]
  %v58 = vld [vmem:[%s2 + $0x28] sm:$0xff]
  %v59 = vld [vmem:[%s2 + $0x30] sm:$0xff]
  %v60 = vld [vmem:[%s2 + $0x38] sm:$0xff]
  %v61 = vld [vmem:[%s2 + $0x40] sm:$0xff]
  %v62 = vld [vmem:[%s2 + $0x48] sm:$0xff]
  %v63 = vld [vmem:[%s2 + $0x50] sm:$0xff]
  %v64 = vld [vmem:[%s2 + $0x58] sm:$0xff]
  %v65 = vld [vmem:[%s2 + $0x60] sm:$0xff]
  %v66 = vld [vmem:[%s2 + $0x68] sm:$0xff]
  %v67 = vld [vmem:[%s2 + $0x70] sm:$0xff]
  %v68 = vld [vmem:[%s2 + $0x78] sm:$0xff]
  %vm69 = vcmask 64512
  %v71 = vsel %vm69, %v51, 0
  %v74 = vsel %vm69, %v52, 0
  %76 = vmatprep.subr.mxu0 0.0
  %77 = vmatpush1.xpose.msra.mxu0 0.0
  %78 = vmatprep.subr.mxu0 0.0
  %79 = vmatpush1.xpose.msra.mxu0 0.0
  %80 = vmatprep.subr.mxu0 0.0
  %81 = vmatpush1.xpose.msra.mxu0 0.0
  %82 = vmatprep.subr.mxu0 0.0
  %83 = vmatpush1.xpose.msra.mxu0 0.0
  %84 = vmatprep.subr.mxu0 0.0
  %85 = vmatpush1.xpose.msra.mxu0 0.0
  %86 = vmatprep.subr.mxu0 0.0
  %87 = vmatpush1.xpose.msra.mxu0 0.0
  %88 = vmatprep.subr.mxu0 0.0
  %89 = vmatpush1.xpose.msra.mxu0 0.0
  %90 = vmatprep.subr.mxu0 0.0
  %91 = vmatpush1.xpose.msra.mxu0 0.0
  %92 = vmatprep.subr.mxu0 0.0
  %93 = vmatpush1.xpose.msra.mxu0 0.0
  %94 = vmatprep.subr.mxu0 0.0
  %95 = vmatpush1.xpose.msra.mxu0 0.0
  %96 = vmatprep.subr.mxu0 0.0
  %97 = vmatpush1.xpose.msra.mxu0 0.0
  %98 = vmatprep.subr.mxu0 0.0
  %99 = vmatpush1.xpose.msra.mxu0 0.0
  %100 = vmatprep.subr.mxu0 0.0
  %101 = vmatpush1.xpose.msra.mxu0 0.0
  %102 = vmatprep.subr.mxu0 0.0
  %103 = vmatpush1.xpose.msra.mxu0 0.0
  %104 = vmatprep.subr.mxu0 0.0
  %105 = vmatpush1.xpose.msra.mxu0 %v74
  %106 = vmatprep.subr.mxu0 0.0
  %107 = vmatpush1.xpose.msra.mxu0 %v71
  %108 = vmatprep.subr.mxu0 0.0
  %109 = vmatpush2.xpose.msra.mxu0 0.0
  %110 = vmatprep.subr.mxu0 0.0
  %111 = vmatpush2.xpose.msra.mxu0 0.0
  %112 = vmatprep.subr.mxu0 0.0
  %113 = vmatpush2.xpose.msra.mxu0 0.0
  %114 = vmatprep.subr.mxu0 0.0
  %115 = vmatpush2.xpose.msra.mxu0 0.0
  %116 = vmatprep.subr.mxu0 0.0
  %117 = vmatpush2.xpose.msra.mxu0 0.0
  %118 = vmatprep.subr.mxu0 0.0
  %119 = vmatpush2.xpose.msra.mxu0 0.0
  %120 = vmatprep.subr.mxu0 0.0
  %121 = vmatpush2.xpose.msra.mxu0 0.0
  %122 = vmatprep.subr.mxu0 0.0
  %123 = vmatpush2.xpose.msra.mxu0 0.0
  %124 = vmatprep.subr.mxu0 0.0
  %125 = vmatpush2.xpose.msra.mxu0 0.0
  %126 = vmatprep.subr.mxu0 0.0
  %127 = vmatpush2.xpose.msra.mxu0 0.0
  %128 = vmatprep.subr.mxu0 0.0
  %129 = vmatpush2.xpose.msra.mxu0 0.0
  %130 = vmatprep.subr.mxu0 0.0
  %131 = vmatpush2.xpose.msra.mxu0 0.0
  %132 = vmatprep.subr.mxu0 0.0
  %133 = vmatpush2.xpose.msra.mxu0 0.0
  %134 = vmatprep.subr.mxu0 0.0
  %135 = vmatpush2.xpose.msra.mxu0 0.0
  %136 = vmatprep.subr.mxu0 0.0
  %137 = vmatpush2.xpose.msra.mxu0 0.0
  %138 = vmatprep.subr.mxu0 0.0
  %139 = vmatpush2.xpose.msra.mxu0 0.0
  %140 = vmatprep.mubr.f32.mxu0 0.0
  %141 = vmatmul.mubr.f32.gmra.mxu0 %v71
  %v142 = vpop.f32.mrf.mxu0
  %v143 = vadd.f32 0.0, %v142
  %v144 = vpop.f32.mrf.mxu0
  %145 = vmatprep.mubr.f32.mxu0 0.0
  %146 = vmatmul.mubr.f32.gmra.mxu0 %v74
  %v147 = vpop.f32.mrf.mxu0
  %v148 = vadd.f32 0.0, %v147
  %v149 = vpop.f32.mrf.mxu0
  %150 = vdwg.mxu0
  %v151 = vmax.f32 %v143, 0.0
  %v152 = vmax.f32 %v148, 0.0
  %vm153 = vcmask 130048
  %v154 = vsel %vm153, %v151, -inf
  %155 = vmax.xlane.f32.xlu0 %v154
  %v156 = vpop.xlane.xlu0 %155
  %v157 = vsel %vm153, %v152, -inf
  %158 = vmax.xlane.f32.xlu0 %v157
  %v159 = vpop.xlane.xlu0 %158
  %v160 = vsub.f32 %v151, %v156
  %v161 = vsub.f32 %v152, %v159
  %v162 = vmul.f32 %v160, 1.442695
  %v163 = vpow.pop %v162
  %v164 = vmul.f32 %v161, 1.442695
  %v165 = vpow.pop %v164
  %v166 = vsel %vm153, %v163, 0.0
  %167 = vadd.xlane.f32.xlu0 %v166
  %v168 = vpop.xlane.xlu0 %167
  %v169 = vsel %vm153, %v165, 0.0
  %170 = vadd.xlane.f32.xlu0 %v169
  %v171 = vpop.xlane.xlu0 %170
  %v172 = vrcp.pop %v168
  %v173 = vrcp.pop %v171
  %v174 = vmul.f32 %v163, %v172
  %v175 = vmul.f32 %v165, %v173
  %v177 = vsel %vm153, %v174, 0
  %v180 = vsel %vm153, %v175, 0
  %182 = vmatprep.subr.mxu0 0.0
  %183 = vmatpush1.msra.mxu0 0.0
  %184 = vmatprep.subr.mxu0 0.0
  %185 = vmatpush1.msra.mxu0 0.0
  %186 = vmatprep.subr.mxu0 0.0
  %187 = vmatpush1.msra.mxu0 0.0
  %188 = vmatprep.subr.mxu0 0.0
  %189 = vmatpush1.msra.mxu0 0.0
  %190 = vmatprep.subr.mxu0 0.0
  %191 = vmatpush1.msra.mxu0 0.0
  %192 = vmatprep.subr.mxu0 0.0
  %193 = vmatpush1.msra.mxu0 0.0
  %194 = vmatprep.subr.mxu0 0.0
  %195 = vmatpush1.msra.mxu0 0.0
  %196 = vmatprep.subr.mxu0 0.0
  %197 = vmatpush1.msra.mxu0 0.0
  %198 = vmatprep.subr.mxu0 0.0
  %199 = vmatpush1.msra.mxu0 0.0
  %200 = vmatprep.subr.mxu0 0.0
  %201 = vmatpush1.msra.mxu0 0.0
  %202 = vmatprep.subr.mxu0 0.0
  %203 = vmatpush1.msra.mxu0 0.0
  %204 = vmatprep.subr.mxu0 0.0
  %205 = vmatpush1.msra.mxu0 0.0
  %206 = vmatprep.subr.mxu0 0.0
  %207 = vmatpush1.msra.mxu0 0.0
  %208 = vmatprep.subr.mxu0 0.0
  %209 = vmatpush1.msra.mxu0 0.0
  %210 = vmatprep.subr.mxu0 0.0
  %211 = vmatpush1.msra.mxu0 %v36
  %212 = vmatprep.subr.mxu0 0.0
  %213 = vmatpush1.msra.mxu0 %v35
  %214 = vmatprep.subr.mxu0 0.0
  %215 = vmatpush2.msra.mxu0 0.0
  %216 = vmatprep.subr.mxu0 0.0
  %217 = vmatpush2.msra.mxu0 0.0
  %218 = vmatprep.subr.mxu0 0.0
  %219 = vmatpush2.msra.mxu0 0.0
  %220 = vmatprep.subr.mxu0 0.0
  %221 = vmatpush2.msra.mxu0 0.0
  %222 = vmatprep.subr.mxu0 0.0
  %223 = vmatpush2.msra.mxu0 0.0
  %224 = vmatprep.subr.mxu0 0.0
  %225 = vmatpush2.msra.mxu0 0.0
  %226 = vmatprep.subr.mxu0 0.0
  %227 = vmatpush2.msra.mxu0 0.0
  %228 = vmatprep.subr.mxu0 0.0
  %229 = vmatpush2.msra.mxu0 0.0
  %230 = vmatprep.subr.mxu0 0.0
  %231 = vmatpush2.msra.mxu0 0.0
  %232 = vmatprep.subr.mxu0 0.0
  %233 = vmatpush2.msra.mxu0 0.0
  %234 = vmatprep.subr.mxu0 0.0
  %235 = vmatpush2.msra.mxu0 0.0
  %236 = vmatprep.subr.mxu0 0.0
  %237 = vmatpush2.msra.mxu0 0.0
  %238 = vmatprep.subr.mxu0 0.0
  %239 = vmatpush2.msra.mxu0 0.0
  %240 = vmatprep.subr.mxu0 0.0
  %241 = vmatpush2.msra.mxu0 0.0
  %242 = vmatprep.subr.mxu0 0.0
  %243 = vmatpush2.msra.mxu0 0.0
  %244 = vmatprep.subr.mxu0 0.0
  %245 = vmatpush2.msra.mxu0 0.0
  %246 = vmatprep.mubr.f32.mxu0 0.0
  %247 = vmatmul.mubr.f32.gmra.mxu0 %v177
  %v248 = vpop.f32.mrf.mxu0
  %v249 = vadd.f32 0.0, %v248
  %v250 = vpop.f32.mrf.mxu0
  %251 = vmatprep.mubr.f32.mxu0 0.0
  %252 = vmatmul.mubr.f32.gmra.mxu0 %v180
  %v253 = vpop.f32.mrf.mxu0
  %v254 = vadd.f32 0.0, %v253
  %v255 = vpop.f32.mrf.mxu0
  %256 = vdwg.mxu0
  %v257 = vadd.f32 %v35, %v249
  %v258 = vadd.f32 %v36, %v254
  %259 = vst.msk [vmem:[#allocation2] sm:$0xff] %vm69, %v257
  %260 = vst.msk [vmem:[#allocation2 + $0x8] sm:$0xff] %vm69, %v258
  %261 = vmatprep.subr.mxu0 0.0
  %262 = vmatpush1.msra.mxu0 0.0
  %263 = vmatprep.subr.mxu0 0.0
  %264 = vmatpush1.msra.mxu0 0.0
  %265 = vmatprep.subr.mxu0 0.0
  %266 = vmatpush1.msra.mxu0 0.0
  %267 = vmatprep.subr.mxu0 0.0
  %268 = vmatpush1.msra.mxu0 0.0
  %269 = vmatprep.subr.mxu0 0.0
  %270 = vmatpush1.msra.mxu0 0.0
  %271 = vmatprep.subr.mxu0 0.0
  %272 = vmatpush1.msra.mxu0 0.0
  %273 = vmatprep.subr.mxu0 0.0
  %274 = vmatpush1.msra.mxu0 0.0
  %275 = vmatprep.subr.mxu0 0.0
  %276 = vmatpush1.msra.mxu0 0.0
  %277 = vmatprep.subr.mxu0 0.0
  %278 = vmatpush1.msra.mxu0 0.0
  %279 = vmatprep.subr.mxu0 0.0
  %280 = vmatpush1.msra.mxu0 0.0
  %281 = vmatprep.subr.mxu0 0.0
  %282 = vmatpush1.msra.mxu0 0.0
  %283 = vmatprep.subr.mxu0 0.0
  %284 = vmatpush1.msra.mxu0 0.0
  %285 = vmatprep.subr.mxu0 0.0
  %286 = vmatpush1.msra.mxu0 0.0
  %287 = vmatprep.subr.mxu0 0.0
  %288 = vmatpush1.msra.mxu0 0.0
  %289 = vmatprep.subr.mxu0 0.0
  %290 = vmatpush1.msra.mxu0 %v38
  %291 = vmatprep.subr.mxu0 0.0
  %292 = vmatpush1.msra.mxu0 %v37
  %293 = vmatprep.subr.mxu0 0.0
  %294 = vmatpush2.msra.mxu0 0.0
  %295 = vmatprep.subr.mxu0 0.0
  %296 = vmatpush2.msra.mxu0 0.0
  %297 = vmatprep.subr.mxu0 0.0
  %298 = vmatpush2.msra.mxu0 0.0
  %299 = vmatprep.subr.mxu0 0.0
  %300 = vmatpush2.msra.mxu0 0.0
  %301 = vmatprep.subr.mxu0 0.0
  %302 = vmatpush2.msra.mxu0 0.0
  %303 = vmatprep.subr.mxu0 0.0
  %304 = vmatpush2.msra.mxu0 0.0
  %305 = vmatprep.subr.mxu0 0.0
  %306 = vmatpush2.msra.mxu0 0.0
  %307 = vmatprep.subr.mxu0 0.0
  %308 = vmatpush2.msra.mxu0 0.0
  %309 = vmatprep.subr.mxu0 0.0
  %310 = vmatpush2.msra.mxu0 0.0
  %311 = vmatprep.subr.mxu0 0.0
  %312 = vmatpush2.msra.mxu0 0.0
  %313 = vmatprep.subr.mxu0 0.0
  %314 = vmatpush2.msra.mxu0 0.0
  %315 = vmatprep.subr.mxu0 0.0
  %316 = vmatpush2.msra.mxu0 0.0
  %317 = vmatprep.subr.mxu0 0.0
  %318 = vmatpush2.msra.mxu0 0.0
  %319 = vmatprep.subr.mxu0 0.0
  %320 = vmatpush2.msra.mxu0 0.0
  %321 = vmatprep.subr.mxu0 0.0
  %322 = vmatpush2.msra.mxu0 0.0
  %323 = vmatprep.subr.mxu0 0.0
  %324 = vmatpush2.msra.mxu0 0.0
  %325 = vmatprep.mubr.f32.mxu0 0.0
  %326 = vmatmul.mubr.f32.gmra.mxu0 %v177
  %v327 = vpop.f32.mrf.mxu0
  %v328 = vadd.f32 0.0, %v327
  %v329 = vpop.f32.mrf.mxu0
  %330 = vmatprep.mubr.f32.mxu0 0.0
  %331 = vmatmul.mubr.f32.gmra.mxu0 %v180
  %v332 = vpop.f32.mrf.mxu0
  %v333 = vadd.f32 0.0, %v332
  %v334 = vpop.f32.mrf.mxu0
  %335 = vdwg.mxu0
  %v336 = vadd.f32 %v37, %v328
  %v337 = vadd.f32 %v38, %v333
  %338 = vst.msk [vmem:[#allocation2 + $0x10] sm:$0xff] %vm69, %v336
  %339 = vst.msk [vmem:[#allocation2 + $0x18] sm:$0xff] %vm69, %v337
  %340 = vmatprep.subr.mxu0 0.0
  %341 = vmatpush1.msra.mxu0 0.0
  %342 = vmatprep.subr.mxu0 0.0
  %343 = vmatpush1.msra.mxu0 0.0
  %344 = vmatprep.subr.mxu0 0.0
  %345 = vmatpush1.msra.mxu0 0.0
  %346 = vmatprep.subr.mxu0 0.0
  %347 = vmatpush1.msra.mxu0 0.0
  %348 = vmatprep.subr.mxu0 0.0
  %349 = vmatpush1.msra.mxu0 0.0
  %350 = vmatprep.subr.mxu0 0.0
  %351 = vmatpush1.msra.mxu0 0.0
  %352 = vmatprep.subr.mxu0 0.0
  %353 = vmatpush1.msra.mxu0 0.0
  %354 = vmatprep.subr.mxu0 0.0
  %355 = vmatpush1.msra.mxu0 0.0
  %356 = vmatprep.subr.mxu0 0.0
  %357 = vmatpush1.msra.mxu0 0.0
  %358 = vmatprep.subr.mxu0 0.0
  %359 = vmatpush1.msra.mxu0 0.0
  %360 = vmatprep.subr.mxu0 0.0
  %361 = vmatpush1.msra.mxu0 0.0
  %362 = vmatprep.subr.mxu0 0.0
  %363 = vmatpush1.msra.mxu0 0.0
  %364 = vmatprep.subr.mxu0 0.0
  %365 = vmatpush1.msra.mxu0 0.0
  %366 = vmatprep.subr.mxu0 0.0
  %367 = vmatpush1.msra.mxu0 0.0
  %368 = vmatprep.subr.mxu0 0.0
  %369 = vmatpush1.msra.mxu0 %v40
  %370 = vmatprep.subr.mxu0 0.0
  %371 = vmatpush1.msra.mxu0 %v39
  %372 = vmatprep.subr.mxu0 0.0
  %373 = vmatpush2.msra.mxu0 0.0
  %374 = vmatprep.subr.mxu0 0.0
  %375 = vmatpush2.msra.mxu0 0.0
  %376 = vmatprep.subr.mxu0 0.0
  %377 = vmatpush2.msra.mxu0 0.0
  %378 = vmatprep.subr.mxu0 0.0
  %379 = vmatpush2.msra.mxu0 0.0
  %380 = vmatprep.subr.mxu0 0.0
  %381 = vmatpush2.msra.mxu0 0.0
  %382 = vmatprep.subr.mxu0 0.0
  %383 = vmatpush2.msra.mxu0 0.0
  %384 = vmatprep.subr.mxu0 0.0
  %385 = vmatpush2.msra.mxu0 0.0
  %386 = vmatprep.subr.mxu0 0.0
  %387 = vmatpush2.msra.mxu0 0.0
  %388 = vmatprep.subr.mxu0 0.0
  %389 = vmatpush2.msra.mxu0 0.0
  %390 = vmatprep.subr.mxu0 0.0
  %391 = vmatpush2.msra.mxu0 0.0
  %392 = vmatprep.subr.mxu0 0.0
  %393 = vmatpush2.msra.mxu0 0.0
  %394 = vmatprep.subr.mxu0 0.0
  %395 = vmatpush2.msra.mxu0 0.0
  %396 = vmatprep.subr.mxu0 0.0
  %397 = vmatpush2.msra.mxu0 0.0
  %398 = vmatprep.subr.mxu0 0.0
  %399 = vmatpush2.msra.mxu0 0.0
  %400 = vmatprep.subr.mxu0 0.0
  %401 = vmatpush2.msra.mxu0 0.0
  %402 = vmatprep.subr.mxu0 0.0
  %403 = vmatpush2.msra.mxu0 0.0
  %404 = vmatprep.mubr.f32.mxu0 0.0
  %405 = vmatmul.mubr.f32.gmra.mxu0 %v177
  %v406 = vpop.f32.mrf.mxu0
  %v407 = vadd.f32 0.0, %v406
  %v408 = vpop.f32.mrf.mxu0
  %409 = vmatprep.mubr.f32.mxu0 0.0
  %410 = vmatmul.mubr.f32.gmra.mxu0 %v180
  %v411 = vpop.f32.mrf.mxu0
  %v412 = vadd.f32 0.0, %v411
  %v413 = vpop.f32.mrf.mxu0
  %414 = vdwg.mxu0
  %v415 = vadd.f32 %v39, %v407
  %v416 = vadd.f32 %v40, %v412
  %417 = vst.msk [vmem:[#allocation2 + $0x20] sm:$0xff] %vm69, %v415
  %418 = vst.msk [vmem:[#allocation2 + $0x28] sm:$0xff] %vm69, %v416
  %419 = vmatprep.subr.mxu0 0.0
  %420 = vmatpush1.msra.mxu0 0.0
  %421 = vmatprep.subr.mxu0 0.0
  %422 = vmatpush1.msra.mxu0 0.0
  %423 = vmatprep.subr.mxu0 0.0
  %424 = vmatpush1.msra.mxu0 0.0
  %425 = vmatprep.subr.mxu0 0.0
  %426 = vmatpush1.msra.mxu0 0.0
  %427 = vmatprep.subr.mxu0 0.0
  %428 = vmatpush1.msra.mxu0 0.0
  %429 = vmatprep.subr.mxu0 0.0
  %430 = vmatpush1.msra.mxu0 0.0
  %431 = vmatprep.subr.mxu0 0.0
  %432 = vmatpush1.msra.mxu0 0.0
  %433 = vmatprep.subr.mxu0 0.0
  %434 = vmatpush1.msra.mxu0 0.0
  %435 = vmatprep.subr.mxu0 0.0
  %436 = vmatpush1.msra.mxu0 0.0
  %437 = vmatprep.subr.mxu0 0.0
  %438 = vmatpush1.msra.mxu0 0.0
  %439 = vmatprep.subr.mxu0 0.0
  %440 = vmatpush1.msra.mxu0 0.0
  %441 = vmatprep.subr.mxu0 0.0
  %442 = vmatpush1.msra.mxu0 0.0
  %443 = vmatprep.subr.mxu0 0.0
  %444 = vmatpush1.msra.mxu0 0.0
  %445 = vmatprep.subr.mxu0 0.0
  %446 = vmatpush1.msra.mxu0 0.0
  %447 = vmatprep.subr.mxu0 0.0
  %448 = vmatpush1.msra.mxu0 %v42
  %449 = vmatprep.subr.mxu0 0.0
  %450 = vmatpush1.msra.mxu0 %v41
  %451 = vmatprep.subr.mxu0 0.0
  %452 = vmatpush2.msra.mxu0 0.0
  %453 = vmatprep.subr.mxu0 0.0
  %454 = vmatpush2.msra.mxu0 0.0
  %455 = vmatprep.subr.mxu0 0.0
  %456 = vmatpush2.msra.mxu0 0.0
  %457 = vmatprep.subr.mxu0 0.0
  %458 = vmatpush2.msra.mxu0 0.0
  %459 = vmatprep.subr.mxu0 0.0
  %460 = vmatpush2.msra.mxu0 0.0
  %461 = vmatprep.subr.mxu0 0.0
  %462 = vmatpush2.msra.mxu0 0.0
  %463 = vmatprep.subr.mxu0 0.0
  %464 = vmatpush2.msra.mxu0 0.0
  %465 = vmatprep.subr.mxu0 0.0
  %466 = vmatpush2.msra.mxu0 0.0
  %467 = vmatprep.subr.mxu0 0.0
  %468 = vmatpush2.msra.mxu0 0.0
  %469 = vmatprep.subr.mxu0 0.0
  %470 = vmatpush2.msra.mxu0 0.0
  %471 = vmatprep.subr.mxu0 0.0
  %472 = vmatpush2.msra.mxu0 0.0
  %473 = vmatprep.subr.mxu0 0.0
  %474 = vmatpush2.msra.mxu0 0.0
  %475 = vmatprep.subr.mxu0 0.0
  %476 = vmatpush2.msra.mxu0 0.0
  %477 = vmatprep.subr.mxu0 0.0
  %478 = vmatpush2.msra.mxu0 0.0
  %479 = vmatprep.subr.mxu0 0.0
  %480 = vmatpush2.msra.mxu0 0.0
  %481 = vmatprep.subr.mxu0 0.0
  %482 = vmatpush2.msra.mxu0 0.0
  %483 = vmatprep.mubr.f32.mxu0 0.0
  %484 = vmatmul.mubr.f32.gmra.mxu0 %v177
  %v485 = vpop.f32.mrf.mxu0
  %v486 = vadd.f32 0.0, %v485
  %v487 = vpop.f32.mrf.mxu0
  %488 = vmatprep.mubr.f32.mxu0 0.0
  %489 = vmatmul.mubr.f32.gmra.mxu0 %v180
  %v490 = vpop.f32.mrf.mxu0
  %v491 = vadd.f32 0.0, %v490
  %v492 = vpop.f32.mrf.mxu0
  %493 = vdwg.mxu0
  %v494 = vadd.f32 %v41, %v486
  %v495 = vadd.f32 %v42, %v491
  %496 = vst.msk [vmem:[#allocation2 + $0x30] sm:$0xff] %vm69, %v494
  %497 = vst.msk [vmem:[#allocation2 + $0x38] sm:$0xff] %vm69, %v495
  %498 = vmatprep.subr.mxu0 0.0
  %499 = vmatpush1.msra.mxu0 0.0
  %500 = vmatprep.subr.mxu0 0.0
  %501 = vmatpush1.msra.mxu0 0.0
  %502 = vmatprep.subr.mxu0 0.0
  %503 = vmatpush1.msra.mxu0 0.0
  %504 = vmatprep.subr.mxu0 0.0
  %505 = vmatpush1.msra.mxu0 0.0
  %506 = vmatprep.subr.mxu0 0.0
  %507 = vmatpush1.msra.mxu0 0.0
  %508 = vmatprep.subr.mxu0 0.0
  %509 = vmatpush1.msra.mxu0 0.0
  %510 = vmatprep.subr.mxu0 0.0
  %511 = vmatpush1.msra.mxu0 0.0
  %512 = vmatprep.subr.mxu0 0.0
  %513 = vmatpush1.msra.mxu0 0.0
  %514 = vmatprep.subr.mxu0 0.0
  %515 = vmatpush1.msra.mxu0 0.0
  %516 = vmatprep.subr.mxu0 0.0
  %517 = vmatpush1.msra.mxu0 0.0
  %518 = vmatprep.subr.mxu0 0.0
  %519 = vmatpush1.msra.mxu0 0.0
  %520 = vmatprep.subr.mxu0 0.0
  %521 = vmatpush1.msra.mxu0 0.0
  %522 = vmatprep.subr.mxu0 0.0
  %523 = vmatpush1.msra.mxu0 0.0
  %524 = vmatprep.subr.mxu0 0.0
  %525 = vmatpush1.msra.mxu0 0.0
  %526 = vmatprep.subr.mxu0 0.0
  %527 = vmatpush1.msra.mxu0 %v44
  %528 = vmatprep.subr.mxu0 0.0
  %529 = vmatpush1.msra.mxu0 %v43
  %530 = vmatprep.subr.mxu0 0.0
  %531 = vmatpush2.msra.mxu0 0.0
  %532 = vmatprep.subr.mxu0 0.0
  %533 = vmatpush2.msra.mxu0 0.0
  %534 = vmatprep.subr.mxu0 0.0
  %535 = vmatpush2.msra.mxu0 0.0
  %536 = vmatprep.subr.mxu0 0.0
  %537 = vmatpush2.msra.mxu0 0.0
  %538 = vmatprep.subr.mxu0 0.0
  %539 = vmatpush2.msra.mxu0 0.0
  %540 = vmatprep.subr.mxu0 0.0
  %541 = vmatpush2.msra.mxu0 0.0
  %542 = vmatprep.subr.mxu0 0.0
  %543 = vmatpush2.msra.mxu0 0.0
  %544 = vmatprep.subr.mxu0 0.0
  %545 = vmatpush2.msra.mxu0 0.0
  %546 = vmatprep.subr.mxu0 0.0
  %547 = vmatpush2.msra.mxu0 0.0
  %548 = vmatprep.subr.mxu0 0.0
  %549 = vmatpush2.msra.mxu0 0.0
  %550 = vmatprep.subr.mxu0 0.0
  %551 = vmatpush2.msra.mxu0 0.0
  %552 = vmatprep.subr.mxu0 0.0
  %553 = vmatpush2.msra.mxu0 0.0
  %554 = vmatprep.subr.mxu0 0.0
  %555 = vmatpush2.msra.mxu0 0.0
  %556 = vmatprep.subr.mxu0 0.0
  %557 = vmatpush2.msra.mxu0 0.0
  %558 = vmatprep.subr.mxu0 0.0
  %559 = vmatpush2.msra.mxu0 0.0
  %560 = vmatprep.subr.mxu0 0.0
  %561 = vmatpush2.msra.mxu0 0.0
  %562 = vmatprep.mubr.f32.mxu0 0.0
  %563 = vmatmul.mubr.f32.gmra.mxu0 %v177
  %v564 = vpop.f32.mrf.mxu0
  %v565 = vadd.f32 0.0, %v564
  %v566 = vpop.f32.mrf.mxu0
  %567 = vmatprep.mubr.f32.mxu0 0.0
  %568 = vmatmul.mubr.f32.gmra.mxu0 %v180
  %v569 = vpop.f32.mrf.mxu0
  %v570 = vadd.f32 0.0, %v569
  %v571 = vpop.f32.mrf.mxu0
  %572 = vdwg.mxu0
  %v573 = vadd.f32 %v43, %v565
  %v574 = vadd.f32 %v44, %v570
  %575 = vst.msk [vmem:[#allocation2 + $0x40] sm:$0xff] %vm69, %v573
  %576 = vst.msk [vmem:[#allocation2 + $0x48] sm:$0xff] %vm69, %v574
  %577 = vmatprep.subr.mxu0 0.0
  %578 = vmatpush1.msra.mxu0 0.0
  %579 = vmatprep.subr.mxu0 0.0
  %580 = vmatpush1.msra.mxu0 0.0
  %581 = vmatprep.subr.mxu0 0.0
  %582 = vmatpush1.msra.mxu0 0.0
  %583 = vmatprep.subr.mxu0 0.0
  %584 = vmatpush1.msra.mxu0 0.0
  %585 = vmatprep.subr.mxu0 0.0
  %586 = vmatpush1.msra.mxu0 0.0
  %587 = vmatprep.subr.mxu0 0.0
  %588 = vmatpush1.msra.mxu0 0.0
  %589 = vmatprep.subr.mxu0 0.0
  %590 = vmatpush1.msra.mxu0 0.0
  %591 = vmatprep.subr.mxu0 0.0
  %592 = vmatpush1.msra.mxu0 0.0
  %593 = vmatprep.subr.mxu0 0.0
  %594 = vmatpush1.msra.mxu0 0.0
  %595 = vmatprep.subr.mxu0 0.0
  %596 = vmatpush1.msra.mxu0 0.0
  %597 = vmatprep.subr.mxu0 0.0
  %598 = vmatpush1.msra.mxu0 0.0
  %599 = vmatprep.subr.mxu0 0.0
  %600 = vmatpush1.msra.mxu0 0.0
  %601 = vmatprep.subr.mxu0 0.0
  %602 = vmatpush1.msra.mxu0 0.0
  %603 = vmatprep.subr.mxu0 0.0
  %604 = vmatpush1.msra.mxu0 0.0
  %605 = vmatprep.subr.mxu0 0.0
  %606 = vmatpush1.msra.mxu0 %v46
  %607 = vmatprep.subr.mxu0 0.0
  %608 = vmatpush1.msra.mxu0 %v45
  %609 = vmatprep.subr.mxu0 0.0
  %610 = vmatpush2.msra.mxu0 0.0
  %611 = vmatprep.subr.mxu0 0.0
  %612 = vmatpush2.msra.mxu0 0.0
  %613 = vmatprep.subr.mxu0 0.0
  %614 = vmatpush2.msra.mxu0 0.0
  %615 = vmatprep.subr.mxu0 0.0
  %616 = vmatpush2.msra.mxu0 0.0
  %617 = vmatprep.subr.mxu0 0.0
  %618 = vmatpush2.msra.mxu0 0.0
  %619 = vmatprep.subr.mxu0 0.0
  %620 = vmatpush2.msra.mxu0 0.0
  %621 = vmatprep.subr.mxu0 0.0
  %622 = vmatpush2.msra.mxu0 0.0
  %623 = vmatprep.subr.mxu0 0.0
  %624 = vmatpush2.msra.mxu0 0.0
  %625 = vmatprep.subr.mxu0 0.0
  %626 = vmatpush2.msra.mxu0 0.0
  %627 = vmatprep.subr.mxu0 0.0
  %628 = vmatpush2.msra.mxu0 0.0
  %629 = vmatprep.subr.mxu0 0.0
  %630 = vmatpush2.msra.mxu0 0.0
  %631 = vmatprep.subr.mxu0 0.0
  %632 = vmatpush2.msra.mxu0 0.0
  %633 = vmatprep.subr.mxu0 0.0
  %634 = vmatpush2.msra.mxu0 0.0
  %635 = vmatprep.subr.mxu0 0.0
  %636 = vmatpush2.msra.mxu0 0.0
  %637 = vmatprep.subr.mxu0 0.0
  %638 = vmatpush2.msra.mxu0 0.0
  %639 = vmatprep.subr.mxu0 0.0
  %640 = vmatpush2.msra.mxu0 0.0
  %641 = vmatprep.mubr.f32.mxu0 0.0
  %642 = vmatmul.mubr.f32.gmra.mxu0 %v177
  %v643 = vpop.f32.mrf.mxu0
  %v644 = vadd.f32 0.0, %v643
  %v645 = vpop.f32.mrf.mxu0
  %646 = vmatprep.mubr.f32.mxu0 0.0
  %647 = vmatmul.mubr.f32.gmra.mxu0 %v180
  %v648 = vpop.f32.mrf.mxu0
  %v649 = vadd.f32 0.0, %v648
  %v650 = vpop.f32.mrf.mxu0
  %651 = vdwg.mxu0
  %v652 = vadd.f32 %v45, %v644
  %v653 = vadd.f32 %v46, %v649
  %654 = vst.msk [vmem:[#allocation2 + $0x50] sm:$0xff] %vm69, %v652
  %655 = vst.msk [vmem:[#allocation2 + $0x58] sm:$0xff] %vm69, %v653
  %656 = vmatprep.subr.mxu0 0.0
  %657 = vmatpush1.msra.mxu0 0.0
  %658 = vmatprep.subr.mxu0 0.0
  %659 = vmatpush1.msra.mxu0 0.0
  %660 = vmatprep.subr.mxu0 0.0
  %661 = vmatpush1.msra.mxu0 0.0
  %662 = vmatprep.subr.mxu0 0.0
  %663 = vmatpush1.msra.mxu0 0.0
  %664 = vmatprep.subr.mxu0 0.0
  %665 = vmatpush1.msra.mxu0 0.0
  %666 = vmatprep.subr.mxu0 0.0
  %667 = vmatpush1.msra.mxu0 0.0
  %668 = vmatprep.subr.mxu0 0.0
  %669 = vmatpush1.msra.mxu0 0.0
  %670 = vmatprep.subr.mxu0 0.0
  %671 = vmatpush1.msra.mxu0 0.0
  %672 = vmatprep.subr.mxu0 0.0
  %673 = vmatpush1.msra.mxu0 0.0
  %674 = vmatprep.subr.mxu0 0.0
  %675 = vmatpush1.msra.mxu0 0.0
  %676 = vmatprep.subr.mxu0 0.0
  %677 = vmatpush1.msra.mxu0 0.0
  %678 = vmatprep.subr.mxu0 0.0
  %679 = vmatpush1.msra.mxu0 0.0
  %680 = vmatprep.subr.mxu0 0.0
  %681 = vmatpush1.msra.mxu0 0.0
  %682 = vmatprep.subr.mxu0 0.0
  %683 = vmatpush1.msra.mxu0 0.0
  %684 = vmatprep.subr.mxu0 0.0
  %685 = vmatpush1.msra.mxu0 %v48
  %686 = vmatprep.subr.mxu0 0.0
  %687 = vmatpush1.msra.mxu0 %v47
  %688 = vmatprep.subr.mxu0 0.0
  %689 = vmatpush2.msra.mxu0 0.0
  %690 = vmatprep.subr.mxu0 0.0
  %691 = vmatpush2.msra.mxu0 0.0
  %692 = vmatprep.subr.mxu0 0.0
  %693 = vmatpush2.msra.mxu0 0.0
  %694 = vmatprep.subr.mxu0 0.0
  %695 = vmatpush2.msra.mxu0 0.0
  %696 = vmatprep.subr.mxu0 0.0
  %697 = vmatpush2.msra.mxu0 0.0
  %698 = vmatprep.subr.mxu0 0.0
  %699 = vmatpush2.msra.mxu0 0.0
  %700 = vmatprep.subr.mxu0 0.0
  %701 = vmatpush2.msra.mxu0 0.0
  %702 = vmatprep.subr.mxu0 0.0
  %703 = vmatpush2.msra.mxu0 0.0
  %704 = vmatprep.subr.mxu0 0.0
  %705 = vmatpush2.msra.mxu0 0.0
  %706 = vmatprep.subr.mxu0 0.0
  %707 = vmatpush2.msra.mxu0 0.0
  %708 = vmatprep.subr.mxu0 0.0
  %709 = vmatpush2.msra.mxu0 0.0
  %710 = vmatprep.subr.mxu0 0.0
  %711 = vmatpush2.msra.mxu0 0.0
  %712 = vmatprep.subr.mxu0 0.0
  %713 = vmatpush2.msra.mxu0 0.0
  %714 = vmatprep.subr.mxu0 0.0
  %715 = vmatpush2.msra.mxu0 0.0
  %716 = vmatprep.subr.mxu0 0.0
  %717 = vmatpush2.msra.mxu0 0.0
  %718 = vmatprep.subr.mxu0 0.0
  %719 = vmatpush2.msra.mxu0 0.0
  %720 = vmatprep.mubr.f32.mxu0 0.0
  %721 = vmatmul.mubr.f32.gmra.mxu0 %v177
  %v722 = vpop.f32.mrf.mxu0
  %v723 = vadd.f32 0.0, %v722
  %v724 = vpop.f32.mrf.mxu0
  %725 = vmatprep.mubr.f32.mxu0 0.0
  %726 = vmatmul.mubr.f32.gmra.mxu0 %v180
  %v727 = vpop.f32.mrf.mxu0
  %v728 = vadd.f32 0.0, %v727
  %v729 = vpop.f32.mrf.mxu0
  %730 = vdwg.mxu0
  %v731 = vadd.f32 %v47, %v723
  %v732 = vadd.f32 %v48, %v728
  %733 = vst.msk [vmem:[#allocation2 + $0x60] sm:$0xff] %vm69, %v731
  %734 = vst.msk [vmem:[#allocation2 + $0x68] sm:$0xff] %vm69, %v732
  %735 = vmatprep.subr.mxu0 0.0
  %736 = vmatpush1.msra.mxu0 0.0
  %737 = vmatprep.subr.mxu0 0.0
  %738 = vmatpush1.msra.mxu0 0.0
  %739 = vmatprep.subr.mxu0 0.0
  %740 = vmatpush1.msra.mxu0 0.0
  %741 = vmatprep.subr.mxu0 0.0
  %742 = vmatpush1.msra.mxu0 0.0
  %743 = vmatprep.subr.mxu0 0.0
  %744 = vmatpush1.msra.mxu0 0.0
  %745 = vmatprep.subr.mxu0 0.0
  %746 = vmatpush1.msra.mxu0 0.0
  %747 = vmatprep.subr.mxu0 0.0
  %748 = vmatpush1.msra.mxu0 0.0
  %749 = vmatprep.subr.mxu0 0.0
  %750 = vmatpush1.msra.mxu0 0.0
  %751 = vmatprep.subr.mxu0 0.0
  %752 = vmatpush1.msra.mxu0 0.0
  %753 = vmatprep.subr.mxu0 0.0
  %754 = vmatpush1.msra.mxu0 0.0
  %755 = vmatprep.subr.mxu0 0.0
  %756 = vmatpush1.msra.mxu0 0.0
  %757 = vmatprep.subr.mxu0 0.0
  %758 = vmatpush1.msra.mxu0 0.0
  %759 = vmatprep.subr.mxu0 0.0
  %760 = vmatpush1.msra.mxu0 0.0
  %761 = vmatprep.subr.mxu0 0.0
  %762 = vmatpush1.msra.mxu0 0.0
  %763 = vmatprep.subr.mxu0 0.0
  %764 = vmatpush1.msra.mxu0 %v50
  %765 = vmatprep.subr.mxu0 0.0
  %766 = vmatpush1.msra.mxu0 %v49
  %767 = vmatprep.subr.mxu0 0.0
  %768 = vmatpush2.msra.mxu0 0.0
  %769 = vmatprep.subr.mxu0 0.0
  %770 = vmatpush2.msra.mxu0 0.0
  %771 = vmatprep.subr.mxu0 0.0
  %772 = vmatpush2.msra.mxu0 0.0
  %773 = vmatprep.subr.mxu0 0.0
  %774 = vmatpush2.msra.mxu0 0.0
  %775 = vmatprep.subr.mxu0 0.0
  %776 = vmatpush2.msra.mxu0 0.0
  %777 = vmatprep.subr.mxu0 0.0
  %778 = vmatpush2.msra.mxu0 0.0
  %779 = vmatprep.subr.mxu0 0.0
  %780 = vmatpush2.msra.mxu0 0.0
  %781 = vmatprep.subr.mxu0 0.0
  %782 = vmatpush2.msra.mxu0 0.0
  %783 = vmatprep.subr.mxu0 0.0
  %784 = vmatpush2.msra.mxu0 0.0
  %785 = vmatprep.subr.mxu0 0.0
  %786 = vmatpush2.msra.mxu0 0.0
  %787 = vmatprep.subr.mxu0 0.0
  %788 = vmatpush2.msra.mxu0 0.0
  %789 = vmatprep.subr.mxu0 0.0
  %790 = vmatpush2.msra.mxu0 0.0
  %791 = vmatprep.subr.mxu0 0.0
  %792 = vmatpush2.msra.mxu0 0.0
  %793 = vmatprep.subr.mxu0 0.0
  %794 = vmatpush2.msra.mxu0 0.0
  %795 = vmatprep.subr.mxu0 0.0
  %796 = vmatpush2.msra.mxu0 0.0
  %797 = vmatprep.subr.mxu0 0.0
  %798 = vmatpush2.msra.mxu0 0.0
  %799 = vmatprep.mubr.f32.mxu0 0.0
  %800 = vmatmul.mubr.f32.gmra.mxu0 %v177
  %v801 = vpop.f32.mrf.mxu0
  %v802 = vadd.f32 0.0, %v801
  %v803 = vpop.f32.mrf.mxu0
  %804 = vmatprep.mubr.f32.mxu0 0.0
  %805 = vmatmul.mubr.f32.gmra.mxu0 %v180
  %v806 = vpop.f32.mrf.mxu0
  %v807 = vadd.f32 0.0, %v806
  %v808 = vpop.f32.mrf.mxu0
  %809 = vdwg.mxu0
  %v810 = vadd.f32 %v49, %v802
  %v811 = vadd.f32 %v50, %v807
  %812 = vst.msk [vmem:[#allocation2 + $0x70] sm:$0xff] %vm69, %v810
  %813 = vst.msk [vmem:[#allocation2 + $0x78] sm:$0xff] %vm69, %v811
  %v814 = vld [vmem:[#allocation2] sm:$0xff]
  %v815 = vld [vmem:[#allocation2 + $0x8] sm:$0xff]
  %v816 = vld [vmem:[#allocation2 + $0x10] sm:$0xff]
  %v817 = vld [vmem:[#allocation2 + $0x18] sm:$0xff]
  %v818 = vld [vmem:[#allocation2 + $0x20] sm:$0xff]
  %v819 = vld [vmem:[#allocation2 + $0x28] sm:$0xff]
  %v820 = vld [vmem:[#allocation2 + $0x30] sm:$0xff]
  %v821 = vld [vmem:[#allocation2 + $0x38] sm:$0xff]
  %v822 = vld [vmem:[#allocation2 + $0x40] sm:$0xff]
  %v823 = vld [vmem:[#allocation2 + $0x48] sm:$0xff]
  %v824 = vld [vmem:[#allocation2 + $0x50] sm:$0xff]
  %v825 = vld [vmem:[#allocation2 + $0x58] sm:$0xff]
  %v826 = vld [vmem:[#allocation2 + $0x60] sm:$0xff]
  %v827 = vld [vmem:[#allocation2 + $0x68] sm:$0xff]
  %v828 = vld [vmem:[#allocation2 + $0x70] sm:$0xff]
  %v829 = vld [vmem:[#allocation2 + $0x78] sm:$0xff]
  %v830 = vld [vmem:[%s3] sm:$0xff]
  %v831 = vld [vmem:[%s3 + $0x8] sm:$0xff]
  %v832 = vld [vmem:[%s3 + $0x10] sm:$0xff]
  %v833 = vld [vmem:[%s3 + $0x18] sm:$0xff]
  %v834 = vld [vmem:[%s3 + $0x20] sm:$0xff]
  %v835 = vld [vmem:[%s3 + $0x28] sm:$0xff]
  %v836 = vld [vmem:[%s3 + $0x30] sm:$0xff]
  %v837 = vld [vmem:[%s3 + $0x38] sm:$0xff]
  %v838 = vld [vmem:[%s3 + $0x40] sm:$0xff]
  %v839 = vld [vmem:[%s3 + $0x48] sm:$0xff]
  %v840 = vld [vmem:[%s3 + $0x50] sm:$0xff]
  %v841 = vld [vmem:[%s3 + $0x58] sm:$0xff]
  %v842 = vld [vmem:[%s3 + $0x60] sm:$0xff]
  %v843 = vld [vmem:[%s3 + $0x68] sm:$0xff]
  %v844 = vld [vmem:[%s3 + $0x70] sm:$0xff]
  %v845 = vld [vmem:[%s3 + $0x78] sm:$0xff]
  %847 = vset.pattern.permute.xlu0 0
  %848 = vperm.xlu0 %847, %v830
  %v849 = vpop.permute.xlu0 %848
  %852 = vset.pattern.permute.xlu0 0
  %853 = vperm.xlu0 %852, %v831
  %v854 = vpop.permute.xlu0 %853
  %857 = vset.pattern.permute.xlu0 0
  %858 = vperm.xlu0 %857, %v832
  %v859 = vpop.permute.xlu0 %858
  %862 = vset.pattern.permute.xlu0 0
  %863 = vperm.xlu0 %862, %v833
  %v864 = vpop.permute.xlu0 %863
  %867 = vset.pattern.permute.xlu0 0
  %868 = vperm.xlu0 %867, %v834
  %v869 = vpop.permute.xlu0 %868
  %872 = vset.pattern.permute.xlu0 0
  %873 = vperm.xlu0 %872, %v835
  %v874 = vpop.permute.xlu0 %873
  %877 = vset.pattern.permute.xlu0 0
  %878 = vperm.xlu0 %877, %v836
  %v879 = vpop.permute.xlu0 %878
  %882 = vset.pattern.permute.xlu0 0
  %883 = vperm.xlu0 %882, %v837
  %v884 = vpop.permute.xlu0 %883
  %887 = vset.pattern.permute.xlu0 0
  %888 = vperm.xlu0 %887, %v838
  %v889 = vpop.permute.xlu0 %888
  %892 = vset.pattern.permute.xlu0 0
  %893 = vperm.xlu0 %892, %v839
  %v894 = vpop.permute.xlu0 %893
  %897 = vset.pattern.permute.xlu0 0
  %898 = vperm.xlu0 %897, %v840
  %v899 = vpop.permute.xlu0 %898
  %902 = vset.pattern.permute.xlu0 0
  %903 = vperm.xlu0 %902, %v841
  %v904 = vpop.permute.xlu0 %903
  %907 = vset.pattern.permute.xlu0 0
  %908 = vperm.xlu0 %907, %v842
  %v909 = vpop.permute.xlu0 %908
  %912 = vset.pattern.permute.xlu0 0
  %913 = vperm.xlu0 %912, %v843
  %v914 = vpop.permute.xlu0 %913
  %917 = vset.pattern.permute.xlu0 0
  %918 = vperm.xlu0 %917, %v844
  %v919 = vpop.permute.xlu0 %918
  %922 = vset.pattern.permute.xlu0 0
  %923 = vperm.xlu0 %922, %v845
  %v924 = vpop.permute.xlu0 %923
  %v926 = vmul.f32 %v849, %v35
  %v927 = vmul.f32 %v854, %v36
  %v928 = vmul.f32 %v859, %v37
  %v929 = vmul.f32 %v864, %v38
  %v930 = vmul.f32 %v869, %v39
  %v931 = vmul.f32 %v874, %v40
  %v932 = vmul.f32 %v879, %v41
  %v933 = vmul.f32 %v884, %v42
  %v934 = vmul.f32 %v889, %v43
  %v935 = vmul.f32 %v894, %v44
  %v936 = vmul.f32 %v899, %v45
  %v937 = vmul.f32 %v904, %v46
  %v938 = vmul.f32 %v909, %v47
  %v939 = vmul.f32 %v914, %v48
  %v940 = vmul.f32 %v919, %v49
  %v941 = vmul.f32 %v924, %v50
  %v942 = vld [vmem:[%s4] sm:$0xff]
  %v943 = vld [vmem:[%s5] sm:$0x1]
  %v945 = vlaneseq
  %v946 = vshrl.u32 %v945, 7
  %v947 = vsub.s32 0, %v946
  %v948 = vrot.slane %v943, %v947
  %v951 = vsel %vm69, %v926, 0
  %v954 = vsel %vm69, %v927, 0
  %v957 = vsel %vm69, %v928, 0
  %v960 = vsel %vm69, %v929, 0
  %v963 = vsel %vm69, %v930, 0
  %v966 = vsel %vm69, %v931, 0
  %v969 = vsel %vm69, %v932, 0
  %v972 = vsel %vm69, %v933, 0
  %v975 = vsel %vm69, %v934, 0
  %v978 = vsel %vm69, %v935, 0
  %v981 = vsel %vm69, %v936, 0
  %v984 = vsel %vm69, %v937, 0
  %v987 = vsel %vm69, %v938, 0
  %v990 = vsel %vm69, %v939, 0
  %v993 = vsel %vm69, %v940, 0
  %v996 = vsel %vm69, %v941, 0
  %998 = vmatprep.subr.mxu0 0.0
  %999 = vmatpush1.msra.mxu0 0.0
  %1000 = vmatprep.subr.mxu0 0.0
  %1001 = vmatpush1.msra.mxu0 0.0
  %1002 = vmatprep.subr.mxu0 0.0
  %1003 = vmatpush1.msra.mxu0 0.0
  %1004 = vmatprep.subr.mxu0 0.0
  %1005 = vmatpush1.msra.mxu0 0.0
  %1006 = vmatprep.subr.mxu0 0.0
  %1007 = vmatpush1.msra.mxu0 0.0
  %1008 = vmatprep.subr.mxu0 0.0
  %1009 = vmatpush1.msra.mxu0 0.0
  %1010 = vmatprep.subr.mxu0 0.0
  %1011 = vmatpush1.msra.mxu0 0.0
  %1012 = vmatprep.subr.mxu0 0.0
  %1013 = vmatpush1.msra.mxu0 0.0
  %1014 = vmatprep.subr.mxu0 0.0
  %1015 = vmatpush1.msra.mxu0 0.0
  %1016 = vmatprep.subr.mxu0 0.0
  %1017 = vmatpush1.msra.mxu0 0.0
  %1018 = vmatprep.subr.mxu0 0.0
  %1019 = vmatpush1.msra.mxu0 0.0
  %1020 = vmatprep.subr.mxu0 0.0
  %1021 = vmatpush1.msra.mxu0 0.0
  %1022 = vmatprep.subr.mxu0 0.0
  %1023 = vmatpush1.msra.mxu0 0.0
  %1024 = vmatprep.subr.mxu0 0.0
  %1025 = vmatpush1.msra.mxu0 0.0
  %1026 = vmatprep.subr.mxu0 0.0
  %1027 = vmatpush1.msra.mxu0 0.0
  %1028 = vmatprep.subr.mxu0 0.0
  %1029 = vmatpush1.msra.mxu0 %v942
  %1030 = vmatprep.subr.mxu0 0.0
  %1031 = vmatpush2.msra.mxu0 0.0
  %1032 = vmatprep.subr.mxu0 0.0
  %1033 = vmatpush2.msra.mxu0 0.0
  %1034 = vmatprep.subr.mxu0 0.0
  %1035 = vmatpush2.msra.mxu0 0.0
  %1036 = vmatprep.subr.mxu0 0.0
  %1037 = vmatpush2.msra.mxu0 0.0
  %1038 = vmatprep.subr.mxu0 0.0
  %1039 = vmatpush2.msra.mxu0 0.0
  %1040 = vmatprep.subr.mxu0 0.0
  %1041 = vmatpush2.msra.mxu0 0.0
  %1042 = vmatprep.subr.mxu0 0.0
  %1043 = vmatpush2.msra.mxu0 0.0
  %1044 = vmatprep.subr.mxu0 0.0
  %1045 = vmatpush2.msra.mxu0 0.0
  %1046 = vmatprep.subr.mxu0 0.0
  %1047 = vmatpush2.msra.mxu0 0.0
  %1048 = vmatprep.subr.mxu0 0.0
  %1049 = vmatpush2.msra.mxu0 0.0
  %1050 = vmatprep.subr.mxu0 0.0
  %1051 = vmatpush2.msra.mxu0 0.0
  %1052 = vmatprep.subr.mxu0 0.0
  %1053 = vmatpush2.msra.mxu0 0.0
  %1054 = vmatprep.subr.mxu0 0.0
  %1055 = vmatpush2.msra.mxu0 0.0
  %1056 = vmatprep.subr.mxu0 0.0
  %1057 = vmatpush2.msra.mxu0 0.0
  %1058 = vmatprep.subr.mxu0 0.0
  %1059 = vmatpush2.msra.mxu0 0.0
  %1060 = vmatprep.subr.mxu0 0.0
  %1061 = vmatpush2.msra.mxu0 0.0
  %1062 = vmatprep.mubr.f32.mxu0 0.0
  %1063 = vmatmul.mubr.f32.gmra.mxu0 %v951
  %v1064 = vpop.f32.mrf.mxu0
  %v1065 = vadd.f32 %v948, %v1064
  %v1066 = vpop.f32.mrf.mxu0
  %1067 = vmatprep.mubr.f32.mxu0 0.0
  %1068 = vmatmul.mubr.f32.gmra.mxu0 %v954
  %v1069 = vpop.f32.mrf.mxu0
  %v1070 = vadd.f32 %v948, %v1069
  %v1071 = vpop.f32.mrf.mxu0
  %1072 = vmatprep.mubr.f32.mxu0 0.0
  %1073 = vmatmul.mubr.f32.gmra.mxu0 %v957
  %v1074 = vpop.f32.mrf.mxu0
  %v1075 = vadd.f32 %v948, %v1074
  %v1076 = vpop.f32.mrf.mxu0
  %1077 = vmatprep.mubr.f32.mxu0 0.0
  %1078 = vmatmul.mubr.f32.gmra.mxu0 %v960
  %v1079 = vpop.f32.mrf.mxu0
  %v1080 = vadd.f32 %v948, %v1079
  %v1081 = vpop.f32.mrf.mxu0
  %1082 = vmatprep.mubr.f32.mxu0 0.0
  %1083 = vmatmul.mubr.f32.gmra.mxu0 %v963
  %v1084 = vpop.f32.mrf.mxu0
  %v1085 = vadd.f32 %v948, %v1084
  %v1086 = vpop.f32.mrf.mxu0
  %1087 = vmatprep.mubr.f32.mxu0 0.0
  %1088 = vmatmul.mubr.f32.gmra.mxu0 %v966
  %v1089 = vpop.f32.mrf.mxu0
  %v1090 = vadd.f32 %v948, %v1089
  %v1091 = vpop.f32.mrf.mxu0
  %1092 = vmatprep.mubr.f32.mxu0 0.0
  %1093 = vmatmul.mubr.f32.gmra.mxu0 %v969
  %v1094 = vpop.f32.mrf.mxu0
  %v1095 = vadd.f32 %v948, %v1094
  %v1096 = vpop.f32.mrf.mxu0
  %1097 = vmatprep.mubr.f32.mxu0 0.0
  %1098 = vmatmul.mubr.f32.gmra.mxu0 %v972
  %v1099 = vpop.f32.mrf.mxu0
  %v1100 = vadd.f32 %v948, %v1099
  %v1101 = vpop.f32.mrf.mxu0
  %1102 = vmatprep.mubr.f32.mxu0 0.0
  %1103 = vmatmul.mubr.f32.gmra.mxu0 %v975
  %v1104 = vpop.f32.mrf.mxu0
  %v1105 = vadd.f32 %v948, %v1104
  %v1106 = vpop.f32.mrf.mxu0
  %1107 = vmatprep.mubr.f32.mxu0 0.0
  %1108 = vmatmul.mubr.f32.gmra.mxu0 %v978
  %v1109 = vpop.f32.mrf.mxu0
  %v1110 = vadd.f32 %v948, %v1109
  %v1111 = vpop.f32.mrf.mxu0
  %1112 = vmatprep.mubr.f32.mxu0 0.0
  %1113 = vmatmul.mubr.f32.gmra.mxu0 %v981
  %v1114 = vpop.f32.mrf.mxu0
  %v1115 = vadd.f32 %v948, %v1114
  %v1116 = vpop.f32.mrf.mxu0
  %1117 = vmatprep.mubr.f32.mxu0 0.0
  %1118 = vmatmul.mubr.f32.gmra.mxu0 %v984
  %v1119 = vpop.f32.mrf.mxu0
  %v1120 = vadd.f32 %v948, %v1119
  %v1121 = vpop.f32.mrf.mxu0
  %1122 = vmatprep.mubr.f32.mxu0 0.0
  %1123 = vmatmul.mubr.f32.gmra.mxu0 %v987
  %v1124 = vpop.f32.mrf.mxu0
  %v1125 = vadd.f32 %v948, %v1124
  %v1126 = vpop.f32.mrf.mxu0
  %1127 = vmatprep.mubr.f32.mxu0 0.0
  %1128 = vmatmul.mubr.f32.gmra.mxu0 %v990
  %v1129 = vpop.f32.mrf.mxu0
  %v1130 = vadd.f32 %v948, %v1129
  %v1131 = vpop.f32.mrf.mxu0
  %1132 = vmatprep.mubr.f32.mxu0 0.0
  %1133 = vmatmul.mubr.f32.gmra.mxu0 %v993
  %v1134 = vpop.f32.mrf.mxu0
  %v1135 = vadd.f32 %v948, %v1134
  %v1136 = vpop.f32.mrf.mxu0
  %1137 = vmatprep.mubr.f32.mxu0 0.0
  %1138 = vmatmul.mubr.f32.gmra.mxu0 %v996
  %v1139 = vpop.f32.mrf.mxu0
  %v1140 = vadd.f32 %v948, %v1139
  %v1141 = vpop.f32.mrf.mxu0
  %1142 = vdwg.mxu0
  %v1143 = vld [vmem:[%s6] sm:$0xff]
  %v1145 = vsel %vm69, %v814, 0
  %v1148 = vsel %vm69, %v815, 0
  %v1151 = vsel %vm69, %v816, 0
  %v1154 = vsel %vm69, %v817, 0
  %v1157 = vsel %vm69, %v818, 0
  %v1160 = vsel %vm69, %v819, 0
  %v1163 = vsel %vm69, %v820, 0
  %v1166 = vsel %vm69, %v821, 0
  %v1169 = vsel %vm69, %v822, 0
  %v1172 = vsel %vm69, %v823, 0
  %v1175 = vsel %vm69, %v824, 0
  %v1178 = vsel %vm69, %v825, 0
  %v1181 = vsel %vm69, %v826, 0
  %v1184 = vsel %vm69, %v827, 0
  %v1187 = vsel %vm69, %v828, 0
  %v1190 = vsel %vm69, %v829, 0
  %1192 = vmatprep.subr.mxu0 0.0
  %1193 = vmatpush1.msra.mxu0 0.0
  %1194 = vmatprep.subr.mxu0 0.0
  %1195 = vmatpush1.msra.mxu0 0.0
  %1196 = vmatprep.subr.mxu0 0.0
  %1197 = vmatpush1.msra.mxu0 0.0
  %1198 = vmatprep.subr.mxu0 0.0
  %1199 = vmatpush1.msra.mxu0 0.0
  %1200 = vmatprep.subr.mxu0 0.0
  %1201 = vmatpush1.msra.mxu0 0.0
  %1202 = vmatprep.subr.mxu0 0.0
  %1203 = vmatpush1.msra.mxu0 0.0
  %1204 = vmatprep.subr.mxu0 0.0
  %1205 = vmatpush1.msra.mxu0 0.0
  %1206 = vmatprep.subr.mxu0 0.0
  %1207 = vmatpush1.msra.mxu0 0.0
  %1208 = vmatprep.subr.mxu0 0.0
  %1209 = vmatpush1.msra.mxu0 0.0
  %1210 = vmatprep.subr.mxu0 0.0
  %1211 = vmatpush1.msra.mxu0 0.0
  %1212 = vmatprep.subr.mxu0 0.0
  %1213 = vmatpush1.msra.mxu0 0.0
  %1214 = vmatprep.subr.mxu0 0.0
  %1215 = vmatpush1.msra.mxu0 0.0
  %1216 = vmatprep.subr.mxu0 0.0
  %1217 = vmatpush1.msra.mxu0 0.0
  %1218 = vmatprep.subr.mxu0 0.0
  %1219 = vmatpush1.msra.mxu0 0.0
  %1220 = vmatprep.subr.mxu0 0.0
  %1221 = vmatpush1.msra.mxu0 0.0
  %1222 = vmatprep.subr.mxu0 0.0
  %1223 = vmatpush1.msra.mxu0 %v1143
  %1224 = vmatprep.subr.mxu0 0.0
  %1225 = vmatpush2.msra.mxu0 0.0
  %1226 = vmatprep.subr.mxu0 0.0
  %1227 = vmatpush2.msra.mxu0 0.0
  %1228 = vmatprep.subr.mxu0 0.0
  %1229 = vmatpush2.msra.mxu0 0.0
  %1230 = vmatprep.subr.mxu0 0.0
  %1231 = vmatpush2.msra.mxu0 0.0
  %1232 = vmatprep.subr.mxu0 0.0
  %1233 = vmatpush2.msra.mxu0 0.0
  %1234 = vmatprep.subr.mxu0 0.0
  %1235 = vmatpush2.msra.mxu0 0.0
  %1236 = vmatprep.subr.mxu0 0.0
  %1237 = vmatpush2.msra.mxu0 0.0
  %1238 = vmatprep.subr.mxu0 0.0
  %1239 = vmatpush2.msra.mxu0 0.0
  %1240 = vmatprep.subr.mxu0 0.0
  %1241 = vmatpush2.msra.mxu0 0.0
  %1242 = vmatprep.subr.mxu0 0.0
  %1243 = vmatpush2.msra.mxu0 0.0
  %1244 = vmatprep.subr.mxu0 0.0
  %1245 = vmatpush2.msra.mxu0 0.0
  %1246 = vmatprep.subr.mxu0 0.0
  %1247 = vmatpush2.msra.mxu0 0.0
  %1248 = vmatprep.subr.mxu0 0.0
  %1249 = vmatpush2.msra.mxu0 0.0
  %1250 = vmatprep.subr.mxu0 0.0
  %1251 = vmatpush2.msra.mxu0 0.0
  %1252 = vmatprep.subr.mxu0 0.0
  %1253 = vmatpush2.msra.mxu0 0.0
  %1254 = vmatprep.subr.mxu0 0.0
  %1255 = vmatpush2.msra.mxu0 0.0
  %1256 = vmatprep.mubr.f32.mxu0 0.0
  %1257 = vmatmul.mubr.f32.gmra.mxu0 %v1145
  %v1258 = vpop.f32.mrf.mxu0
  %v1259 = vadd.f32 0.0, %v1258
  %v1260 = vpop.f32.mrf.mxu0
  %1261 = vmatprep.mubr.f32.mxu0 0.0
  %1262 = vmatmul.mubr.f32.gmra.mxu0 %v1148
  %v1263 = vpop.f32.mrf.mxu0
  %v1264 = vadd.f32 0.0, %v1263
  %v1265 = vpop.f32.mrf.mxu0
  %1266 = vmatprep.mubr.f32.mxu0 0.0
  %1267 = vmatmul.mubr.f32.gmra.mxu0 %v1151
  %v1268 = vpop.f32.mrf.mxu0
  %v1269 = vadd.f32 0.0, %v1268
  %v1270 = vpop.f32.mrf.mxu0
  %1271 = vmatprep.mubr.f32.mxu0 0.0
  %1272 = vmatmul.mubr.f32.gmra.mxu0 %v1154
  %v1273 = vpop.f32.mrf.mxu0
  %v1274 = vadd.f32 0.0, %v1273
  %v1275 = vpop.f32.mrf.mxu0
  %1276 = vmatprep.mubr.f32.mxu0 0.0
  %1277 = vmatmul.mubr.f32.gmra.mxu0 %v1157
  %v1278 = vpop.f32.mrf.mxu0
  %v1279 = vadd.f32 0.0, %v1278
  %v1280 = vpop.f32.mrf.mxu0
  %1281 = vmatprep.mubr.f32.mxu0 0.0
  %1282 = vmatmul.mubr.f32.gmra.mxu0 %v1160
  %v1283 = vpop.f32.mrf.mxu0
  %v1284 = vadd.f32 0.0, %v1283
  %v1285 = vpop.f32.mrf.mxu0
  %1286 = vmatprep.mubr.f32.mxu0 0.0
  %1287 = vmatmul.mubr.f32.gmra.mxu0 %v1163
  %v1288 = vpop.f32.mrf.mxu0
  %v1289 = vadd.f32 0.0, %v1288
  %v1290 = vpop.f32.mrf.mxu0
  %1291 = vmatprep.mubr.f32.mxu0 0.0
  %1292 = vmatmul.mubr.f32.gmra.mxu0 %v1166
  %v1293 = vpop.f32.mrf.mxu0
  %v1294 = vadd.f32 0.0, %v1293
  %v1295 = vpop.f32.mrf.mxu0
  %1296 = vmatprep.mubr.f32.mxu0 0.0
  %1297 = vmatmul.mubr.f32.gmra.mxu0 %v1169
  %v1298 = vpop.f32.mrf.mxu0
  %v1299 = vadd.f32 0.0, %v1298
  %v1300 = vpop.f32.mrf.mxu0
  %1301 = vmatprep.mubr.f32.mxu0 0.0
  %1302 = vmatmul.mubr.f32.gmra.mxu0 %v1172
  %v1303 = vpop.f32.mrf.mxu0
  %v1304 = vadd.f32 0.0, %v1303
  %v1305 = vpop.f32.mrf.mxu0
  %1306 = vmatprep.mubr.f32.mxu0 0.0
  %1307 = vmatmul.mubr.f32.gmra.mxu0 %v1175
  %v1308 = vpop.f32.mrf.mxu0
  %v1309 = vadd.f32 0.0, %v1308
  %v1310 = vpop.f32.mrf.mxu0
  %1311 = vmatprep.mubr.f32.mxu0 0.0
  %1312 = vmatmul.mubr.f32.gmra.mxu0 %v1178
  %v1313 = vpop.f32.mrf.mxu0
  %v1314 = vadd.f32 0.0, %v1313
  %v1315 = vpop.f32.mrf.mxu0
  %1316 = vmatprep.mubr.f32.mxu0 0.0
  %1317 = vmatmul.mubr.f32.gmra.mxu0 %v1181
  %v1318 = vpop.f32.mrf.mxu0
  %v1319 = vadd.f32 0.0, %v1318
  %v1320 = vpop.f32.mrf.mxu0
  %1321 = vmatprep.mubr.f32.mxu0 0.0
  %1322 = vmatmul.mubr.f32.gmra.mxu0 %v1184
  %v1323 = vpop.f32.mrf.mxu0
  %v1324 = vadd.f32 0.0, %v1323
  %v1325 = vpop.f32.mrf.mxu0
  %1326 = vmatprep.mubr.f32.mxu0 0.0
  %1327 = vmatmul.mubr.f32.gmra.mxu0 %v1187
  %v1328 = vpop.f32.mrf.mxu0
  %v1329 = vadd.f32 0.0, %v1328
  %v1330 = vpop.f32.mrf.mxu0
  %1331 = vmatprep.mubr.f32.mxu0 0.0
  %1332 = vmatmul.mubr.f32.gmra.mxu0 %v1190
  %v1333 = vpop.f32.mrf.mxu0
  %v1334 = vadd.f32 0.0, %v1333
  %v1335 = vpop.f32.mrf.mxu0
  %1336 = vdwg.mxu0
  %v1337 = vld [vmem:[%s8] sm:$0xff]
  %v1339 = vsel %vm69, %v53, 0
  %v1342 = vsel %vm69, %v54, 0
  %v1345 = vsel %vm69, %v55, 0
  %v1348 = vsel %vm69, %v56, 0
  %v1351 = vsel %vm69, %v57, 0
  %v1354 = vsel %vm69, %v58, 0
  %v1357 = vsel %vm69, %v59, 0
  %v1360 = vsel %vm69, %v60, 0
  %v1363 = vsel %vm69, %v61, 0
  %v1366 = vsel %vm69, %v62, 0
  %v1369 = vsel %vm69, %v63, 0
  %v1372 = vsel %vm69, %v64, 0
  %v1375 = vsel %vm69, %v65, 0
  %v1378 = vsel %vm69, %v66, 0
  %v1381 = vsel %vm69, %v67, 0
  %v1384 = vsel %vm69, %v68, 0
  %1386 = vmatprep.subr.mxu0 0.0
  %1387 = vmatpush1.msra.mxu0 0.0
  %1388 = vmatprep.subr.mxu0 0.0
  %1389 = vmatpush1.msra.mxu0 0.0
  %1390 = vmatprep.subr.mxu0 0.0
  %1391 = vmatpush1.msra.mxu0 0.0
  %1392 = vmatprep.subr.mxu0 0.0
  %1393 = vmatpush1.msra.mxu0 0.0
  %1394 = vmatprep.subr.mxu0 0.0
  %1395 = vmatpush1.msra.mxu0 0.0
  %1396 = vmatprep.subr.mxu0 0.0
  %1397 = vmatpush1.msra.mxu0 0.0
  %1398 = vmatprep.subr.mxu0 0.0
  %1399 = vmatpush1.msra.mxu0 0.0
  %1400 = vmatprep.subr.mxu0 0.0
  %1401 = vmatpush1.msra.mxu0 0.0
  %1402 = vmatprep.subr.mxu0 0.0
  %1403 = vmatpush1.msra.mxu0 0.0
  %1404 = vmatprep.subr.mxu0 0.0
  %1405 = vmatpush1.msra.mxu0 0.0
  %1406 = vmatprep.subr.mxu0 0.0
  %1407 = vmatpush1.msra.mxu0 0.0
  %1408 = vmatprep.subr.mxu0 0.0
  %1409 = vmatpush1.msra.mxu0 0.0
  %1410 = vmatprep.subr.mxu0 0.0
  %1411 = vmatpush1.msra.mxu0 0.0
  %1412 = vmatprep.subr.mxu0 0.0
  %1413 = vmatpush1.msra.mxu0 0.0
  %1414 = vmatprep.subr.mxu0 0.0
  %1415 = vmatpush1.msra.mxu0 0.0
  %1416 = vmatprep.subr.mxu0 0.0
  %1417 = vmatpush1.msra.mxu0 %v1337
  %1418 = vmatprep.subr.mxu0 0.0
  %1419 = vmatpush2.msra.mxu0 0.0
  %1420 = vmatprep.subr.mxu0 0.0
  %1421 = vmatpush2.msra.mxu0 0.0
  %1422 = vmatprep.subr.mxu0 0.0
  %1423 = vmatpush2.msra.mxu0 0.0
  %1424 = vmatprep.subr.mxu0 0.0
  %1425 = vmatpush2.msra.mxu0 0.0
  %1426 = vmatprep.subr.mxu0 0.0
  %1427 = vmatpush2.msra.mxu0 0.0
  %1428 = vmatprep.subr.mxu0 0.0
  %1429 = vmatpush2.msra.mxu0 0.0
  %1430 = vmatprep.subr.mxu0 0.0
  %1431 = vmatpush2.msra.mxu0 0.0
  %1432 = vmatprep.subr.mxu0 0.0
  %1433 = vmatpush2.msra.mxu0 0.0
  %1434 = vmatprep.subr.mxu0 0.0
  %1435 = vmatpush2.msra.mxu0 0.0
  %1436 = vmatprep.subr.mxu0 0.0
  %1437 = vmatpush2.msra.mxu0 0.0
  %1438 = vmatprep.subr.mxu0 0.0
  %1439 = vmatpush2.msra.mxu0 0.0
  %1440 = vmatprep.subr.mxu0 0.0
  %1441 = vmatpush2.msra.mxu0 0.0
  %1442 = vmatprep.subr.mxu0 0.0
  %1443 = vmatpush2.msra.mxu0 0.0
  %1444 = vmatprep.subr.mxu0 0.0
  %1445 = vmatpush2.msra.mxu0 0.0
  %1446 = vmatprep.subr.mxu0 0.0
  %1447 = vmatpush2.msra.mxu0 0.0
  %1448 = vmatprep.subr.mxu0 0.0
  %1449 = vmatpush2.msra.mxu0 0.0
  %1450 = vmatprep.mubr.f32.mxu0 0.0
  %1451 = vmatmul.mubr.f32.gmra.mxu0 %v1339
  %v1452 = vpop.f32.mrf.mxu0
  %v1453 = vadd.f32 0.0, %v1452
  %v1454 = vpop.f32.mrf.mxu0
  %1455 = vmatprep.mubr.f32.mxu0 0.0
  %1456 = vmatmul.mubr.f32.gmra.mxu0 %v1342
  %v1457 = vpop.f32.mrf.mxu0
  %v1458 = vadd.f32 0.0, %v1457
  %v1459 = vpop.f32.mrf.mxu0
  %1460 = vmatprep.mubr.f32.mxu0 0.0
  %1461 = vmatmul.mubr.f32.gmra.mxu0 %v1345
  %v1462 = vpop.f32.mrf.mxu0
  %v1463 = vadd.f32 0.0, %v1462
  %v1464 = vpop.f32.mrf.mxu0
  %1465 = vmatprep.mubr.f32.mxu0 0.0
  %1466 = vmatmul.mubr.f32.gmra.mxu0 %v1348
  %v1467 = vpop.f32.mrf.mxu0
  %v1468 = vadd.f32 0.0, %v1467
  %v1469 = vpop.f32.mrf.mxu0
  %1470 = vmatprep.mubr.f32.mxu0 0.0
  %1471 = vmatmul.mubr.f32.gmra.mxu0 %v1351
  %v1472 = vpop.f32.mrf.mxu0
  %v1473 = vadd.f32 0.0, %v1472
  %v1474 = vpop.f32.mrf.mxu0
  %1475 = vmatprep.mubr.f32.mxu0 0.0
  %1476 = vmatmul.mubr.f32.gmra.mxu0 %v1354
  %v1477 = vpop.f32.mrf.mxu0
  %v1478 = vadd.f32 0.0, %v1477
  %v1479 = vpop.f32.mrf.mxu0
  %1480 = vmatprep.mubr.f32.mxu0 0.0
  %1481 = vmatmul.mubr.f32.gmra.mxu0 %v1357
  %v1482 = vpop.f32.mrf.mxu0
  %v1483 = vadd.f32 0.0, %v1482
  %v1484 = vpop.f32.mrf.mxu0
  %1485 = vmatprep.mubr.f32.mxu0 0.0
  %1486 = vmatmul.mubr.f32.gmra.mxu0 %v1360
  %v1487 = vpop.f32.mrf.mxu0
  %v1488 = vadd.f32 0.0, %v1487
  %v1489 = vpop.f32.mrf.mxu0
  %1490 = vmatprep.mubr.f32.mxu0 0.0
  %1491 = vmatmul.mubr.f32.gmra.mxu0 %v1363
  %v1492 = vpop.f32.mrf.mxu0
  %v1493 = vadd.f32 0.0, %v1492
  %v1494 = vpop.f32.mrf.mxu0
  %1495 = vmatprep.mubr.f32.mxu0 0.0
  %1496 = vmatmul.mubr.f32.gmra.mxu0 %v1366
  %v1497 = vpop.f32.mrf.mxu0
  %v1498 = vadd.f32 0.0, %v1497
  %v1499 = vpop.f32.mrf.mxu0
  %1500 = vmatprep.mubr.f32.mxu0 0.0
  %1501 = vmatmul.mubr.f32.gmra.mxu0 %v1369
  %v1502 = vpop.f32.mrf.mxu0
  %v1503 = vadd.f32 0.0, %v1502
  %v1504 = vpop.f32.mrf.mxu0
  %1505 = vmatprep.mubr.f32.mxu0 0.0
  %1506 = vmatmul.mubr.f32.gmra.mxu0 %v1372
  %v1507 = vpop.f32.mrf.mxu0
  %v1508 = vadd.f32 0.0, %v1507
  %v1509 = vpop.f32.mrf.mxu0
  %1510 = vmatprep.mubr.f32.mxu0 0.0
  %1511 = vmatmul.mubr.f32.gmra.mxu0 %v1375
  %v1512 = vpop.f32.mrf.mxu0
  %v1513 = vadd.f32 0.0, %v1512
  %v1514 = vpop.f32.mrf.mxu0
  %1515 = vmatprep.mubr.f32.mxu0 0.0
  %1516 = vmatmul.mubr.f32.gmra.mxu0 %v1378
  %v1517 = vpop.f32.mrf.mxu0
  %v1518 = vadd.f32 0.0, %v1517
  %v1519 = vpop.f32.mrf.mxu0
  %1520 = vmatprep.mubr.f32.mxu0 0.0
  %1521 = vmatmul.mubr.f32.gmra.mxu0 %v1381
  %v1522 = vpop.f32.mrf.mxu0
  %v1523 = vadd.f32 0.0, %v1522
  %v1524 = vpop.f32.mrf.mxu0
  %1525 = vmatprep.mubr.f32.mxu0 0.0
  %1526 = vmatmul.mubr.f32.gmra.mxu0 %v1384
  %v1527 = vpop.f32.mrf.mxu0
  %v1528 = vadd.f32 0.0, %v1527
  %v1529 = vpop.f32.mrf.mxu0
  %1530 = vdwg.mxu0
  %v1531 = vmul.f32 %v1259, %v1453
  %v1532 = vmul.f32 %v1264, %v1458
  %v1533 = vmul.f32 %v1269, %v1463
  %v1534 = vmul.f32 %v1274, %v1468
  %v1535 = vmul.f32 %v1279, %v1473
  %v1536 = vmul.f32 %v1284, %v1478
  %v1537 = vmul.f32 %v1289, %v1483
  %v1538 = vmul.f32 %v1294, %v1488
  %v1539 = vmul.f32 %v1299, %v1493
  %v1540 = vmul.f32 %v1304, %v1498
  %v1541 = vmul.f32 %v1309, %v1503
  %v1542 = vmul.f32 %v1314, %v1508
  %v1543 = vmul.f32 %v1319, %v1513
  %v1544 = vmul.f32 %v1324, %v1518
  %v1545 = vmul.f32 %v1329, %v1523
  %v1546 = vmul.f32 %v1334, %v1528
  %v1547 = vld [vmem:[%s9] sm:$0xff]
  %v1548 = vld [vmem:[%s9 + $0x8] sm:$0xff]
  %v1549 = vld [vmem:[%s9 + $0x10] sm:$0xff]
  %v1550 = vld [vmem:[%s9 + $0x18] sm:$0xff]
  %v1551 = vld [vmem:[%s9 + $0x20] sm:$0xff]
  %v1552 = vld [vmem:[%s9 + $0x28] sm:$0xff]
  %v1553 = vld [vmem:[%s9 + $0x30] sm:$0xff]
  %v1554 = vld [vmem:[%s9 + $0x38] sm:$0xff]
  %v1555 = vld [vmem:[%s9 + $0x40] sm:$0xff]
  %v1556 = vld [vmem:[%s9 + $0x48] sm:$0xff]
  %v1557 = vld [vmem:[%s9 + $0x50] sm:$0xff]
  %v1558 = vld [vmem:[%s9 + $0x58] sm:$0xff]
  %v1559 = vld [vmem:[%s9 + $0x60] sm:$0xff]
  %v1560 = vld [vmem:[%s9 + $0x68] sm:$0xff]
  %v1561 = vld [vmem:[%s9 + $0x70] sm:$0xff]
  %v1562 = vld [vmem:[%s9 + $0x78] sm:$0xff]
  %v1563 = vld [vmem:[%s7] sm:$0xff]
  %1564 = vmatprep.subr.mxu0 0.0
  %1565 = vmatpush1.msra.mxu0 0.0
  %1566 = vmatprep.subr.mxu0 0.0
  %1567 = vmatpush1.msra.mxu0 0.0
  %1568 = vmatprep.subr.mxu0 0.0
  %1569 = vmatpush1.msra.mxu0 0.0
  %1570 = vmatprep.subr.mxu0 0.0
  %1571 = vmatpush1.msra.mxu0 0.0
  %1572 = vmatprep.subr.mxu0 0.0
  %1573 = vmatpush1.msra.mxu0 0.0
  %1574 = vmatprep.subr.mxu0 0.0
  %1575 = vmatpush1.msra.mxu0 0.0
  %1576 = vmatprep.subr.mxu0 0.0
  %1577 = vmatpush1.msra.mxu0 0.0
  %1578 = vmatprep.subr.mxu0 0.0
  %1579 = vmatpush1.msra.mxu0 0.0
  %1580 = vmatprep.subr.mxu0 0.0
  %1581 = vmatpush1.msra.mxu0 0.0
  %1582 = vmatprep.subr.mxu0 0.0
  %1583 = vmatpush1.msra.mxu0 0.0
  %1584 = vmatprep.subr.mxu0 0.0
  %1585 = vmatpush1.msra.mxu0 0.0
  %1586 = vmatprep.subr.mxu0 0.0
  %1587 = vmatpush1.msra.mxu0 0.0
  %1588 = vmatprep.subr.mxu0 0.0
  %1589 = vmatpush1.msra.mxu0 0.0
  %1590 = vmatprep.subr.mxu0 0.0
  %1591 = vmatpush1.msra.mxu0 0.0
  %1592 = vmatprep.subr.mxu0 0.0
  %1593 = vmatpush1.msra.mxu0 0.0
  %1594 = vmatprep.subr.mxu0 0.0
  %1595 = vmatpush1.msra.mxu0 %v1563
  %1596 = vmatprep.subr.mxu0 0.0
  %1597 = vmatpush2.msra.mxu0 0.0
  %1598 = vmatprep.subr.mxu0 0.0
  %1599 = vmatpush2.msra.mxu0 0.0
  %1600 = vmatprep.subr.mxu0 0.0
  %1601 = vmatpush2.msra.mxu0 0.0
  %1602 = vmatprep.subr.mxu0 0.0
  %1603 = vmatpush2.msra.mxu0 0.0
  %1604 = vmatprep.subr.mxu0 0.0
  %1605 = vmatpush2.msra.mxu0 0.0
  %1606 = vmatprep.subr.mxu0 0.0
  %1607 = vmatpush2.msra.mxu0 0.0
  %1608 = vmatprep.subr.mxu0 0.0
  %1609 = vmatpush2.msra.mxu0 0.0
  %1610 = vmatprep.subr.mxu0 0.0
  %1611 = vmatpush2.msra.mxu0 0.0
  %1612 = vmatprep.subr.mxu0 0.0
  %1613 = vmatpush2.msra.mxu0 0.0
  %1614 = vmatprep.subr.mxu0 0.0
  %1615 = vmatpush2.msra.mxu0 0.0
  %1616 = vmatprep.subr.mxu0 0.0
  %1617 = vmatpush2.msra.mxu0 0.0
  %1618 = vmatprep.subr.mxu0 0.0
  %1619 = vmatpush2.msra.mxu0 0.0
  %1620 = vmatprep.subr.mxu0 0.0
  %1621 = vmatpush2.msra.mxu0 0.0
  %1622 = vmatprep.subr.mxu0 0.0
  %1623 = vmatpush2.msra.mxu0 0.0
  %1624 = vmatprep.subr.mxu0 0.0
  %1625 = vmatpush2.msra.mxu0 0.0
  %1626 = vmatprep.subr.mxu0 0.0
  %1627 = vmatpush2.msra.mxu0 0.0
  %1628 = vmatprep.mubr.f32.mxu0 0.0
  %1629 = vmatmul.mubr.f32.gmra.mxu0 %v1339
  %v1630 = vpop.f32.mrf.mxu0
  %v1631 = vadd.f32 0.0, %v1630
  %v1632 = vpop.f32.mrf.mxu0
  %1633 = vmatprep.mubr.f32.mxu0 0.0
  %1634 = vmatmul.mubr.f32.gmra.mxu0 %v1342
  %v1635 = vpop.f32.mrf.mxu0
  %v1636 = vadd.f32 0.0, %v1635
  %v1637 = vpop.f32.mrf.mxu0
  %1638 = vmatprep.mubr.f32.mxu0 0.0
  %1639 = vmatmul.mubr.f32.gmra.mxu0 %v1345
  %v1640 = vpop.f32.mrf.mxu0
  %v1641 = vadd.f32 0.0, %v1640
  %v1642 = vpop.f32.mrf.mxu0
  %1643 = vmatprep.mubr.f32.mxu0 0.0
  %1644 = vmatmul.mubr.f32.gmra.mxu0 %v1348
  %v1645 = vpop.f32.mrf.mxu0
  %v1646 = vadd.f32 0.0, %v1645
  %v1647 = vpop.f32.mrf.mxu0
  %1648 = vmatprep.mubr.f32.mxu0 0.0
  %1649 = vmatmul.mubr.f32.gmra.mxu0 %v1351
  %v1650 = vpop.f32.mrf.mxu0
  %v1651 = vadd.f32 0.0, %v1650
  %v1652 = vpop.f32.mrf.mxu0
  %1653 = vmatprep.mubr.f32.mxu0 0.0
  %1654 = vmatmul.mubr.f32.gmra.mxu0 %v1354
  %v1655 = vpop.f32.mrf.mxu0
  %v1656 = vadd.f32 0.0, %v1655
  %v1657 = vpop.f32.mrf.mxu0
  %1658 = vmatprep.mubr.f32.mxu0 0.0
  %1659 = vmatmul.mubr.f32.gmra.mxu0 %v1357
  %v1660 = vpop.f32.mrf.mxu0
  %v1661 = vadd.f32 0.0, %v1660
  %v1662 = vpop.f32.mrf.mxu0
  %1663 = vmatprep.mubr.f32.mxu0 0.0
  %1664 = vmatmul.mubr.f32.gmra.mxu0 %v1360
  %v1665 = vpop.f32.mrf.mxu0
  %v1666 = vadd.f32 0.0, %v1665
  %v1667 = vpop.f32.mrf.mxu0
  %1668 = vmatprep.mubr.f32.mxu0 0.0
  %1669 = vmatmul.mubr.f32.gmra.mxu0 %v1363
  %v1670 = vpop.f32.mrf.mxu0
  %v1671 = vadd.f32 0.0, %v1670
  %v1672 = vpop.f32.mrf.mxu0
  %1673 = vmatprep.mubr.f32.mxu0 0.0
  %1674 = vmatmul.mubr.f32.gmra.mxu0 %v1366
  %v1675 = vpop.f32.mrf.mxu0
  %v1676 = vadd.f32 0.0, %v1675
  %v1677 = vpop.f32.mrf.mxu0
  %1678 = vmatprep.mubr.f32.mxu0 0.0
  %1679 = vmatmul.mubr.f32.gmra.mxu0 %v1369
  %v1680 = vpop.f32.mrf.mxu0
  %v1681 = vadd.f32 0.0, %v1680
  %v1682 = vpop.f32.mrf.mxu0
  %1683 = vmatprep.mubr.f32.mxu0 0.0
  %1684 = vmatmul.mubr.f32.gmra.mxu0 %v1372
  %v1685 = vpop.f32.mrf.mxu0
  %v1686 = vadd.f32 0.0, %v1685
  %v1687 = vpop.f32.mrf.mxu0
  %1688 = vmatprep.mubr.f32.mxu0 0.0
  %1689 = vmatmul.mubr.f32.gmra.mxu0 %v1375
  %v1690 = vpop.f32.mrf.mxu0
  %v1691 = vadd.f32 0.0, %v1690
  %v1692 = vpop.f32.mrf.mxu0
  %1693 = vmatprep.mubr.f32.mxu0 0.0
  %1694 = vmatmul.mubr.f32.gmra.mxu0 %v1378
  %v1695 = vpop.f32.mrf.mxu0
  %v1696 = vadd.f32 0.0, %v1695
  %v1697 = vpop.f32.mrf.mxu0
  %1698 = vmatprep.mubr.f32.mxu0 0.0
  %1699 = vmatmul.mubr.f32.gmra.mxu0 %v1381
  %v1700 = vpop.f32.mrf.mxu0
  %v1701 = vadd.f32 0.0, %v1700
  %v1702 = vpop.f32.mrf.mxu0
  %1703 = vmatprep.mubr.f32.mxu0 0.0
  %1704 = vmatmul.mubr.f32.gmra.mxu0 %v1384
  %v1705 = vpop.f32.mrf.mxu0
  %v1706 = vadd.f32 0.0, %v1705
  %v1707 = vpop.f32.mrf.mxu0
  %1708 = vdwg.mxu0
  %1709 = vmatprep.subr.mxu0 0.0
  %1710 = vmatpush1.msra.mxu0 %v1562
  %1711 = vmatprep.subr.mxu0 0.0
  %1712 = vmatpush1.msra.mxu0 %v1561
  %1713 = vmatprep.subr.mxu0 0.0
  %1714 = vmatpush1.msra.mxu0 %v1560
  %1715 = vmatprep.subr.mxu0 0.0
  %1716 = vmatpush1.msra.mxu0 %v1559
  %1717 = vmatprep.subr.mxu0 0.0
  %1718 = vmatpush1.msra.mxu0 %v1558
  %1719 = vmatprep.subr.mxu0 0.0
  %1720 = vmatpush1.msra.mxu0 %v1557
  %1721 = vmatprep.subr.mxu0 0.0
  %1722 = vmatpush1.msra.mxu0 %v1556
  %1723 = vmatprep.subr.mxu0 0.0
  %1724 = vmatpush1.msra.mxu0 %v1555
  %1725 = vmatprep.subr.mxu0 0.0
  %1726 = vmatpush1.msra.mxu0 %v1554
  %1727 = vmatprep.subr.mxu0 0.0
  %1728 = vmatpush1.msra.mxu0 %v1553
  %1729 = vmatprep.subr.mxu0 0.0
  %1730 = vmatpush1.msra.mxu0 %v1552
  %1731 = vmatprep.subr.mxu0 0.0
  %1732 = vmatpush1.msra.mxu0 %v1551
  %1733 = vmatprep.subr.mxu0 0.0
  %1734 = vmatpush1.msra.mxu0 %v1550
  %1735 = vmatprep.subr.mxu0 0.0
  %1736 = vmatpush1.msra.mxu0 %v1549
  %1737 = vmatprep.subr.mxu0 0.0
  %1738 = vmatpush1.msra.mxu0 %v1548
  %1739 = vmatprep.subr.mxu0 0.0
  %1740 = vmatpush1.msra.mxu0 %v1547
  %1741 = vmatprep.subr.mxu0 0.0
  %1742 = vmatpush2.msra.mxu0 0.0
  %1743 = vmatprep.subr.mxu0 0.0
  %1744 = vmatpush2.msra.mxu0 0.0
  %1745 = vmatprep.subr.mxu0 0.0
  %1746 = vmatpush2.msra.mxu0 0.0
  %1747 = vmatprep.subr.mxu0 0.0
  %1748 = vmatpush2.msra.mxu0 0.0
  %1749 = vmatprep.subr.mxu0 0.0
  %1750 = vmatpush2.msra.mxu0 0.0
  %1751 = vmatprep.subr.mxu0 0.0
  %1752 = vmatpush2.msra.mxu0 0.0
  %1753 = vmatprep.subr.mxu0 0.0
  %1754 = vmatpush2.msra.mxu0 0.0
  %1755 = vmatprep.subr.mxu0 0.0
  %1756 = vmatpush2.msra.mxu0 0.0
  %1757 = vmatprep.subr.mxu0 0.0
  %1758 = vmatpush2.msra.mxu0 0.0
  %1759 = vmatprep.subr.mxu0 0.0
  %1760 = vmatpush2.msra.mxu0 0.0
  %1761 = vmatprep.subr.mxu0 0.0
  %1762 = vmatpush2.msra.mxu0 0.0
  %1763 = vmatprep.subr.mxu0 0.0
  %1764 = vmatpush2.msra.mxu0 0.0
  %1765 = vmatprep.subr.mxu0 0.0
  %1766 = vmatpush2.msra.mxu0 0.0
  %1767 = vmatprep.subr.mxu0 0.0
  %1768 = vmatpush2.msra.mxu0 0.0
  %1769 = vmatprep.subr.mxu0 0.0
  %1770 = vmatpush2.msra.mxu0 0.0
  %1771 = vmatprep.subr.mxu0 0.0
  %1772 = vmatpush2.msra.mxu0 0.0
  %1773 = vmatprep.mubr.f32.mxu0 0.0
  %1774 = vmatmul.mubr.f32.gmra.mxu0 %v1531
  %v1775 = vpop.f32.mrf.mxu0
  %v1776 = vadd.f32 %v1631, %v1775
  %v1777 = vpop.f32.mrf.mxu0
  %1778 = vmatprep.mubr.f32.mxu0 0.0
  %1779 = vmatmul.mubr.f32.gmra.mxu0 %v1532
  %v1780 = vpop.f32.mrf.mxu0
  %v1781 = vadd.f32 %v1636, %v1780
  %v1782 = vpop.f32.mrf.mxu0
  %1783 = vmatprep.mubr.f32.mxu0 0.0
  %1784 = vmatmul.mubr.f32.gmra.mxu0 %v1533
  %v1785 = vpop.f32.mrf.mxu0
  %v1786 = vadd.f32 %v1641, %v1785
  %v1787 = vpop.f32.mrf.mxu0
  %1788 = vmatprep.mubr.f32.mxu0 0.0
  %1789 = vmatmul.mubr.f32.gmra.mxu0 %v1534
  %v1790 = vpop.f32.mrf.mxu0
  %v1791 = vadd.f32 %v1646, %v1790
  %v1792 = vpop.f32.mrf.mxu0
  %1793 = vmatprep.mubr.f32.mxu0 0.0
  %1794 = vmatmul.mubr.f32.gmra.mxu0 %v1535
  %v1795 = vpop.f32.mrf.mxu0
  %v1796 = vadd.f32 %v1651, %v1795
  %v1797 = vpop.f32.mrf.mxu0
  %1798 = vmatprep.mubr.f32.mxu0 0.0
  %1799 = vmatmul.mubr.f32.gmra.mxu0 %v1536
  %v1800 = vpop.f32.mrf.mxu0
  %v1801 = vadd.f32 %v1656, %v1800
  %v1802 = vpop.f32.mrf.mxu0
  %1803 = vmatprep.mubr.f32.mxu0 0.0
  %1804 = vmatmul.mubr.f32.gmra.mxu0 %v1537
  %v1805 = vpop.f32.mrf.mxu0
  %v1806 = vadd.f32 %v1661, %v1805
  %v1807 = vpop.f32.mrf.mxu0
  %1808 = vmatprep.mubr.f32.mxu0 0.0
  %1809 = vmatmul.mubr.f32.gmra.mxu0 %v1538
  %v1810 = vpop.f32.mrf.mxu0
  %v1811 = vadd.f32 %v1666, %v1810
  %v1812 = vpop.f32.mrf.mxu0
  %1813 = vmatprep.mubr.f32.mxu0 0.0
  %1814 = vmatmul.mubr.f32.gmra.mxu0 %v1539
  %v1815 = vpop.f32.mrf.mxu0
  %v1816 = vadd.f32 %v1671, %v1815
  %v1817 = vpop.f32.mrf.mxu0
  %1818 = vmatprep.mubr.f32.mxu0 0.0
  %1819 = vmatmul.mubr.f32.gmra.mxu0 %v1540
  %v1820 = vpop.f32.mrf.mxu0
  %v1821 = vadd.f32 %v1676, %v1820
  %v1822 = vpop.f32.mrf.mxu0
  %1823 = vmatprep.mubr.f32.mxu0 0.0
  %1824 = vmatmul.mubr.f32.gmra.mxu0 %v1541
  %v1825 = vpop.f32.mrf.mxu0
  %v1826 = vadd.f32 %v1681, %v1825
  %v1827 = vpop.f32.mrf.mxu0
  %1828 = vmatprep.mubr.f32.mxu0 0.0
  %1829 = vmatmul.mubr.f32.gmra.mxu0 %v1542
  %v1830 = vpop.f32.mrf.mxu0
  %v1831 = vadd.f32 %v1686, %v1830
  %v1832 = vpop.f32.mrf.mxu0
  %1833 = vmatprep.mubr.f32.mxu0 0.0
  %1834 = vmatmul.mubr.f32.gmra.mxu0 %v1543
  %v1835 = vpop.f32.mrf.mxu0
  %v1836 = vadd.f32 %v1691, %v1835
  %v1837 = vpop.f32.mrf.mxu0
  %1838 = vmatprep.mubr.f32.mxu0 0.0
  %1839 = vmatmul.mubr.f32.gmra.mxu0 %v1544
  %v1840 = vpop.f32.mrf.mxu0
  %v1841 = vadd.f32 %v1696, %v1840
  %v1842 = vpop.f32.mrf.mxu0
  %1843 = vmatprep.mubr.f32.mxu0 0.0
  %1844 = vmatmul.mubr.f32.gmra.mxu0 %v1545
  %v1845 = vpop.f32.mrf.mxu0
  %v1846 = vadd.f32 %v1701, %v1845
  %v1847 = vpop.f32.mrf.mxu0
  %1848 = vmatprep.mubr.f32.mxu0 0.0
  %1849 = vmatmul.mubr.f32.gmra.mxu0 %v1546
  %v1850 = vpop.f32.mrf.mxu0
  %v1851 = vadd.f32 %v1706, %v1850
  %v1852 = vpop.f32.mrf.mxu0
  %1853 = vdwg.mxu0
  %v1854 = vxor.u32 %v1065, 2147483648
  %v1855 = vxor.u32 %v1070, 2147483648
  %v1856 = vxor.u32 %v1075, 2147483648
  %v1857 = vxor.u32 %v1080, 2147483648
  %v1858 = vxor.u32 %v1085, 2147483648
  %v1859 = vxor.u32 %v1090, 2147483648
  %v1860 = vxor.u32 %v1095, 2147483648
  %v1861 = vxor.u32 %v1100, 2147483648
  %v1862 = vxor.u32 %v1105, 2147483648
  %v1863 = vxor.u32 %v1110, 2147483648
  %v1864 = vxor.u32 %v1115, 2147483648
  %v1865 = vxor.u32 %v1120, 2147483648
  %v1866 = vxor.u32 %v1125, 2147483648
  %v1867 = vxor.u32 %v1130, 2147483648
  %v1868 = vxor.u32 %v1135, 2147483648
  %v1869 = vxor.u32 %v1140, 2147483648
  %v1870 = vmul.f32 %v1854, 1.442695
  %v1871 = vpow.pop %v1870
  %v1872 = vmul.f32 %v1855, 1.442695
  %v1873 = vpow.pop %v1872
  %v1874 = vmul.f32 %v1856, 1.442695
  %v1875 = vpow.pop %v1874
  %v1876 = vmul.f32 %v1857, 1.442695
  %v1877 = vpow.pop %v1876
  %v1878 = vmul.f32 %v1858, 1.442695
  %v1879 = vpow.pop %v1878
  %v1880 = vmul.f32 %v1859, 1.442695
  %v1881 = vpow.pop %v1880
  %v1882 = vmul.f32 %v1860, 1.442695
  %v1883 = vpow.pop %v1882
  %v1884 = vmul.f32 %v1861, 1.442695
  %v1885 = vpow.pop %v1884
  %v1886 = vmul.f32 %v1862, 1.442695
  %v1887 = vpow.pop %v1886
  %v1888 = vmul.f32 %v1863, 1.442695
  %v1889 = vpow.pop %v1888
  %v1890 = vmul.f32 %v1864, 1.442695
  %v1891 = vpow.pop %v1890
  %v1892 = vmul.f32 %v1865, 1.442695
  %v1893 = vpow.pop %v1892
  %v1894 = vmul.f32 %v1866, 1.442695
  %v1895 = vpow.pop %v1894
  %v1896 = vmul.f32 %v1867, 1.442695
  %v1897 = vpow.pop %v1896
  %v1898 = vmul.f32 %v1868, 1.442695
  %v1899 = vpow.pop %v1898
  %v1900 = vmul.f32 %v1869, 1.442695
  %v1901 = vpow.pop %v1900
  %v1902 = vadd.f32 %v1871, 1.0
  %v1903 = vadd.f32 %v1873, 1.0
  %v1904 = vadd.f32 %v1875, 1.0
  %v1905 = vadd.f32 %v1877, 1.0
  %v1906 = vadd.f32 %v1879, 1.0
  %v1907 = vadd.f32 %v1881, 1.0
  %v1908 = vadd.f32 %v1883, 1.0
  %v1909 = vadd.f32 %v1885, 1.0
  %v1910 = vadd.f32 %v1887, 1.0
  %v1911 = vadd.f32 %v1889, 1.0
  %v1912 = vadd.f32 %v1891, 1.0
  %v1913 = vadd.f32 %v1893, 1.0
  %v1914 = vadd.f32 %v1895, 1.0
  %v1915 = vadd.f32 %v1897, 1.0
  %v1916 = vadd.f32 %v1899, 1.0
  %v1917 = vadd.f32 %v1901, 1.0
  %v1918 = vrcp.pop %v1902
  %v1919 = vmul.f32 1.0, %v1918
  %v1920 = vrcp.pop %v1903
  %v1921 = vmul.f32 1.0, %v1920
  %v1922 = vrcp.pop %v1904
  %v1923 = vmul.f32 1.0, %v1922
  %v1924 = vrcp.pop %v1905
  %v1925 = vmul.f32 1.0, %v1924
  %v1926 = vrcp.pop %v1906
  %v1927 = vmul.f32 1.0, %v1926
  %v1928 = vrcp.pop %v1907
  %v1929 = vmul.f32 1.0, %v1928
  %v1930 = vrcp.pop %v1908
  %v1931 = vmul.f32 1.0, %v1930
  %v1932 = vrcp.pop %v1909
  %v1933 = vmul.f32 1.0, %v1932
  %v1934 = vrcp.pop %v1910
  %v1935 = vmul.f32 1.0, %v1934
  %v1936 = vrcp.pop %v1911
  %v1937 = vmul.f32 1.0, %v1936
  %v1938 = vrcp.pop %v1912
  %v1939 = vmul.f32 1.0, %v1938
  %v1940 = vrcp.pop %v1913
  %v1941 = vmul.f32 1.0, %v1940
  %v1942 = vrcp.pop %v1914
  %v1943 = vmul.f32 1.0, %v1942
  %v1944 = vrcp.pop %v1915
  %v1945 = vmul.f32 1.0, %v1944
  %v1946 = vrcp.pop %v1916
  %v1947 = vmul.f32 1.0, %v1946
  %v1948 = vrcp.pop %v1917
  %v1949 = vmul.f32 1.0, %v1948
  %v1950 = vmul.f32 %v1919, %v1065
  %v1951 = vmul.f32 %v1921, %v1070
  %v1952 = vmul.f32 %v1923, %v1075
  %v1953 = vmul.f32 %v1925, %v1080
  %v1954 = vmul.f32 %v1927, %v1085
  %v1955 = vmul.f32 %v1929, %v1090
  %v1956 = vmul.f32 %v1931, %v1095
  %v1957 = vmul.f32 %v1933, %v1100
  %v1958 = vmul.f32 %v1935, %v1105
  %v1959 = vmul.f32 %v1937, %v1110
  %v1960 = vmul.f32 %v1939, %v1115
  %v1961 = vmul.f32 %v1941, %v1120
  %v1962 = vmul.f32 %v1943, %v1125
  %v1963 = vmul.f32 %v1945, %v1130
  %v1964 = vmul.f32 %v1947, %v1135
  %v1965 = vmul.f32 %v1949, %v1140
  %v1966 = vadd.f32 %v1776, %v1950
  %v1967 = vadd.f32 %v1781, %v1951
  %v1968 = vadd.f32 %v1786, %v1952
  %v1969 = vadd.f32 %v1791, %v1953
  %v1970 = vadd.f32 %v1796, %v1954
  %v1971 = vadd.f32 %v1801, %v1955
  %v1972 = vadd.f32 %v1806, %v1956
  %v1973 = vadd.f32 %v1811, %v1957
  %v1974 = vadd.f32 %v1816, %v1958
  %v1975 = vadd.f32 %v1821, %v1959
  %v1976 = vadd.f32 %v1826, %v1960
  %v1977 = vadd.f32 %v1831, %v1961
  %v1978 = vadd.f32 %v1836, %v1962
  %v1979 = vadd.f32 %v1841, %v1963
  %v1980 = vadd.f32 %v1846, %v1964
  %v1981 = vadd.f32 %v1851, %v1965
  %1982 = vst.msk [vmem:[%s10] sm:$0xff] %vm153, %v1966
  %1983 = vst.msk [vmem:[%s10 + $0x8] sm:$0xff] %vm153, %v1967
  %1984 = vst.msk [vmem:[%s10 + $0x10] sm:$0xff] %vm153, %v1968
  %1985 = vst.msk [vmem:[%s10 + $0x18] sm:$0xff] %vm153, %v1969
  %1986 = vst.msk [vmem:[%s10 + $0x20] sm:$0xff] %vm153, %v1970
  %1987 = vst.msk [vmem:[%s10 + $0x28] sm:$0xff] %vm153, %v1971
  %1988 = vst.msk [vmem:[%s10 + $0x30] sm:$0xff] %vm153, %v1972
  %1989 = vst.msk [vmem:[%s10 + $0x38] sm:$0xff] %vm153, %v1973
  %1990 = vst.msk [vmem:[%s10 + $0x40] sm:$0xff] %vm153, %v1974
  %1991 = vst.msk [vmem:[%s10 + $0x48] sm:$0xff] %vm153, %v1975
  %1992 = vst.msk [vmem:[%s10 + $0x50] sm:$0xff] %vm153, %v1976
  %1993 = vst.msk [vmem:[%s10 + $0x58] sm:$0xff] %vm153, %v1977
  %1994 = vst.msk [vmem:[%s10 + $0x60] sm:$0xff] %vm153, %v1978
  %1995 = vst.msk [vmem:[%s10 + $0x68] sm:$0xff] %vm153, %v1979
  %1996 = vst.msk [vmem:[%s10 + $0x70] sm:$0xff] %vm153, %v1980
  %1997 = vst.msk [vmem:[%s10 + $0x78] sm:$0xff] %vm153, %v1981
  // Predicated region
  $region42: #{tpu_custom_call.1} parent=0 // pred_check
    _
  $region43: #{tpu_custom_call.1} parent=0 // pred_check_branch
    %1999 = sbr.rel (0) target = $region45
  $region44: #{tpu_custom_call.1} parent=0 // pred_region
    _
  $region45: #{tpu_custom_call.1} parent=0 // pred_fallthru
    _
  // Predicated region
  $region46: #{tpu_custom_call.1} parent=0 // pred_check
    _
  $region47: #{tpu_custom_call.1} parent=0 // pred_check_branch
    %2001 = sbr.rel (0) target = $region49
  $region48: #{tpu_custom_call.1} parent=0 // pred_region
    _
  $region49: #{tpu_custom_call.1} parent=0 // pred_fallthru
    _

</llo_original>
